<compile_context>
chip_gen: v5e
topology: v5e:2x2
jax: 0.10.0
libtpu: 0.0.40
codegen_flags: <defaults>
</compile_context>

<pallas_src>
import jax
import jax.numpy as jnp
from jax import lax
from jax.experimental import pallas as pl
from jax.experimental.pallas import tpu as pltpu


def _fold_bn(w, gamma, beta, mean, var, eps):
    """Fold eval-mode BatchNorm into a (bias-free) conv. w has torch layout (C_out, ...)."""
    scale = gamma / jnp.sqrt(var + eps)
    w_f = w * scale.reshape((-1,) + (1,) * (w.ndim - 1))
    b_f = beta - mean * scale
    return w_f, b_f


def make_proxyless_block(N, H, W, C_in, C_out, K, stride, expansion):
    C_mid = C_in * expansion
    use_bc = expansion > 1
    pad = (K - 1) // 2
    Ho = (H + 2 * pad - K) // stride + 1
    Wo = (W + 2 * pad - K) // stride + 1
    Hp, Wp = H + 2 * pad, W + 2 * pad

    def kernel(*args):
        if use_bc:
            (x_ref, wbc_ref, bbc_ref, wdw_ref, bdw_ref,
             wpwT_ref, bpw_ref, o_ref, pad_ref) = args
        else:
            (x_ref, wdw_ref, bdw_ref,
             wpwT_ref, bpw_ref, o_ref, pad_ref) = args

        x = x_ref[0]                                     # (H, W, C_in) bf16

        # ---- bc_conv: 1x1 conv + BN + ReLU6 (bf16 MXU, f32 accumulate) ----
        if use_bc:
            h = jnp.dot(x.reshape(H * W, C_in), wbc_ref[...],
                        preferred_element_type=jnp.float32)
            h = jnp.clip(h + bbc_ref[...], 0.0, 6.0)
            mid = h.reshape(H, W, C_mid)                 # f32
        else:
            mid = x.astype(jnp.float32)                  # C_mid == C_in

        # ---- dw_conv: KxK depthwise conv, stride s, + BN + ReLU6 ----
        # Clear only the pad border; the interior is fully overwritten below.
        if pad > 0:
            pad_ref[0:pad, :, :] = jnp.zeros((pad, Wp, C_mid), jnp.float32)
            pad_ref[pad + H:Hp, :, :] = jnp.zeros((pad, Wp, C_mid), jnp.float32)
            pad_ref[pad:pad + H, 0:pad, :] = jnp.zeros((H, pad, C_mid), jnp.float32)
            pad_ref[pad:pad + H, pad + W:Wp, :] = jnp.zeros((H, pad, C_mid), jnp.float32)
        pad_ref[pad:pad + H, pad:pad + W, :] = mid

        # Hoist depthwise weight/bias loads out of the K*K tap loop.
        wdw = wdw_ref[...].astype(jnp.float32)           # (K*K, C_mid)
        bdw = bdw_ref[...]                               # (1, C_mid) f32

        acc = jnp.zeros((Ho, Wo, C_mid), jnp.float32)
        for dy in range(K):
            for dx in range(K):
                if stride == 1:
                    tap = pad_ref[dy:dy + Ho, dx:dx + Wo, :]
                else:
                    # For stride>1, a one-time even/odd deinterleave of the padded
                    # map would turn these strided reads into unit-stride loads.
                    tap = pad_ref[pl.ds(dy, Ho, stride), pl.ds(dx, Wo, stride), :]
                acc = acc + tap * wdw[dy * K + dx]
        acc = jnp.clip(acc + bdw, 0.0, 6.0)

        # ---- pw_conv: 1x1 conv + BN (no activation), lane-dense output ----
        # NT matmul: (C_out, C_mid) x (Ho*Wo, C_mid)^T -> (C_out, Ho*Wo); the
        # store's last dim is Ho*Wo (>=128) and the result is flattened NCHW.
        acc2 = acc.reshape(Ho * Wo, C_mid)
        out = lax.dot_general(wpwT_ref[...], acc2,
                              dimension_numbers=(((1,), (1,)), ((), ())),
                              preferred_element_type=jnp.float32)
        out = out + bpw_ref[...]                         # (C_out, Ho*Wo) + (C_out, 1)
        o_ref[0] = out.astype(o_ref.dtype)

    in_specs = [pl.BlockSpec((1, H, W, C_in), lambda n: (n, 0, 0, 0))]
    if use_bc:
        in_specs += [pl.BlockSpec((C_in, C_mid), lambda n: (0, 0)),
                     pl.BlockSpec((1, C_mid), lambda n: (0, 0))]
    in_specs += [pl.BlockSpec((K * K, C_mid), lambda n: (0, 0)),
                 pl.BlockSpec((1, C_mid), lambda n: (0, 0)),
                 pl.BlockSpec((C_out, C_mid), lambda n: (0, 0)),
                 pl.BlockSpec((C_out, 1), lambda n: (0, 0))]

    grid_spec = pltpu.PrefetchScalarGridSpec(
        num_scalar_prefetch=0,
        grid=(N,),
        in_specs=in_specs,
        out_specs=pl.BlockSpec((1, C_out, Ho * Wo), lambda n: (n, 0, 0)),
        scratch_shapes=[pltpu.VMEM((Hp, Wp, C_mid), jnp.float32)],
    )

    fn = pl.pallas_call(
        kernel,
        grid_spec=grid_spec,
        out_shape=jax.ShapeDtypeStruct((N, C_out, Ho * Wo), jnp.float32),
        compiler_params=pltpu.CompilerParams(
            dimension_semantics=("parallel",),
            vmem_limit_bytes=32 * 1024 * 1024,
        ),
    )
    return fn, (Ho, Wo)


def reference_nhwc(x, wbc, bbc, wdw_kkc, bdw, wpw, bpw, K, stride, pad, use_bc):
    """Plain-JAX f32 reference computed on the same (bf16-rounded) values."""
    h = x
    if use_bc:
        h = jnp.clip(jnp.einsum('nhwc,cd->nhwd', h, wbc,
                                precision=lax.Precision.HIGHEST) + bbc, 0.0, 6.0)
    n, H, W, C = h.shape
    Ho = (H + 2 * pad - K) // stride + 1
    Wo = (W + 2 * pad - K) // stride + 1
    hp = jnp.pad(h, ((0, 0), (pad, pad), (pad, pad), (0, 0)))
    w = wdw_kkc.reshape(K, K, C)
    acc = jnp.zeros((n, Ho, Wo, C), jnp.float32)
    for dy in range(K):
        for dx in range(K):
            tap = hp[:, dy:dy + (Ho - 1) * stride + 1:stride,
                     dx:dx + (Wo - 1) * stride + 1:stride, :]
            acc = acc + tap * w[dy, dx]
    acc = jnp.clip(acc + bdw, 0.0, 6.0)
    return jnp.einsum('nhwc,cd->nhwd', acc, wpw,
                      precision=lax.Precision.HIGHEST) + bpw


if __name__ == "__main__":
    # Small, module-consistent shapes.
    N, C_in, H, W = 2, 4, 16, 16
    C_out, K, stride, expansion = 8, 3, 1, 6
    bn_eps = 1e-5
    C_mid = C_in * expansion
    pad = (K - 1) // 2
    use_bc = expansion > 1

    key = jax.random.PRNGKey(0)
    ks = list(jax.random.split(key, 16))

    # --- deterministic parameter init (torch weight layouts), BN folded ---
    # bc_conv: conv1x1 (C_mid, C_in, 1, 1) + BN(C_mid)
    w_bc_t = 0.1 * jax.random.normal(ks[0], (C_mid, C_in, 1, 1), jnp.float32)
    g_bc = 1.0 + 0.1 * jax.random.normal(ks[1], (C_mid,), jnp.float32)
    b_bc = 0.1 * jax.random.normal(ks[2], (C_mid,), jnp.float32)
    m_bc = 0.05 * jax.random.normal(ks[3], (C_mid,), jnp.float32)
    v_bc = 1.0 + 0.1 * jax.random.uniform(ks[4], (C_mid,), jnp.float32)
    w_bc_f, bias_bc = _fold_bn(w_bc_t, g_bc, b_bc, m_bc, v_bc, bn_eps)
    wbc = w_bc_f[:, :, 0, 0].T.astype(jnp.bfloat16)      # (C_in, C_mid) bf16
    bbc = bias_bc.reshape(1, C_mid)                      # f32

    # dw_conv: depthwise conv (C_mid, 1, K, K) + BN(C_mid)
    w_dw_t = 0.2 * jax.random.normal(ks[5], (C_mid, 1, K, K), jnp.float32)
    g_dw = 1.0 + 0.1 * jax.random.normal(ks[6], (C_mid,), jnp.float32)
    b_dw = 0.1 * jax.random.normal(ks[7], (C_mid,), jnp.float32)
    m_dw = 0.05 * jax.random.normal(ks[8], (C_mid,), jnp.float32)
    v_dw = 1.0 + 0.1 * jax.random.uniform(ks[9], (C_mid,), jnp.float32)
    w_dw_f, bias_dw = _fold_bn(w_dw_t, g_dw, b_dw, m_dw, v_dw, bn_eps)
    wdw = jnp.transpose(w_dw_f[:, 0], (1, 2, 0)).reshape(K * K, C_mid).astype(jnp.bfloat16)
    bdw = bias_dw.reshape(1, C_mid)                      # f32

    # pw_conv: conv1x1 (C_out, C_mid, 1, 1) + BN(C_out), no activation
    w_pw_t = 0.1 * jax.random.normal(ks[10], (C_out, C_mid, 1, 1), jnp.float32)
    g_pw = 1.0 + 0.1 * jax.random.normal(ks[11], (C_out,), jnp.float32)
    b_pw = 0.1 * jax.random.normal(ks[12], (C_out,), jnp.float32)
    m_pw = 0.05 * jax.random.normal(ks[13], (C_out,), jnp.float32)
    v_pw = 1.0 + 0.1 * jax.random.uniform(ks[14], (C_out,), jnp.float32)
    w_pw_f, bias_pw = _fold_bn(w_pw_t, g_pw, b_pw, m_pw, v_pw, bn_eps)
    wpwT = w_pw_f[:, :, 0, 0]                            # (C_out, C_mid) f32 (NT lhs)
    bpw_col = bias_pw.reshape(C_out, 1)                  # f32, broadcast along lanes

    # --- input: NHWC end-to-end (no NCHW<->NHWC HBM transpose passes), bf16 ---
    x_nhwc = jax.random.normal(ks[15], (N, H, W, C_in), jnp.float32).astype(jnp.bfloat16)

    block_fn, (Ho, Wo) = make_proxyless_block(N, H, W, C_in, C_out, K, stride, expansion)
    if use_bc:
        out_flat = block_fn(x_nhwc, wbc, bbc, wdw, bdw, wpwT, bpw_col)
    else:
        out_flat = block_fn(x_nhwc, wdw, bdw, wpwT, bpw_col)
    out_nchw = out_flat.reshape(N, C_out, Ho, Wo)        # already NCHW order (free reshape)
    jax.block_until_ready(out_nchw)

    # --- correctness check vs plain-JAX f32 reference on the same rounded values ---
    ref = reference_nhwc(x_nhwc.astype(jnp.float32),
                         wbc.astype(jnp.float32), bbc,
                         wdw.astype(jnp.float32), bdw,
                         wpwT.T, bias_pw.reshape(1, C_out),
                         K, stride, pad, use_bc)
    ref_nchw = jnp.transpose(ref, (0, 3, 1, 2))
    if not jnp.allclose(out_nchw, ref_nchw, atol=5e-3, rtol=5e-3):
        err = jnp.max(jnp.abs(out_nchw - ref_nchw))
        raise AssertionError(f"Pallas ProxylessBlock mismatch vs reference (max abs err {err})")

    print("KERNEL_OK")
</pallas_src>

<mosaic_0001>
module attributes {stable_mosaic.version = 11 : i64} {
  func.func @kernel(%arg0: i32, %arg1: memref<1x16x16x4xbf16, #tpu.memory_space<vmem>>, %arg2: memref<4x24xbf16, #tpu.memory_space<vmem>>, %arg3: memref<1x24xf32, #tpu.memory_space<vmem>>, %arg4: memref<9x24xbf16, #tpu.memory_space<vmem>>, %arg5: memref<1x24xf32, #tpu.memory_space<vmem>>, %arg6: memref<8x24xf32, #tpu.memory_space<vmem>>, %arg7: memref<8x1xf32, #tpu.memory_space<vmem>>, %arg8: memref<1x8x256xf32, #tpu.memory_space<vmem>>, %arg9: memref<18x18x24xf32, #tpu.memory_space<vmem>>) attributes {dimension_semantics = [#tpu.dimension_semantics<parallel>], iteration_bounds = array<i64: 2>, scalar_prefetch = 0 : i64, scratch_operands = 1 : i64, tpu.core_type = #tpu.core_type<tc>, window_params = [{transform_indices = @transform_0, window_bounds = array<i64: 1, 16, 16, 4>}, {pipeline_mode = #tpu.pipeline_mode<synchronous>, transform_indices = @transform_1, window_bounds = array<i64: 4, 24>}, {pipeline_mode = #tpu.pipeline_mode<synchronous>, transform_indices = @transform_2, window_bounds = array<i64: 1, 24>}, {pipeline_mode = #tpu.pipeline_mode<synchronous>, transform_indices = @transform_3, window_bounds = array<i64: 9, 24>}, {pipeline_mode = #tpu.pipeline_mode<synchronous>, transform_indices = @transform_4, window_bounds = array<i64: 1, 24>}, {pipeline_mode = #tpu.pipeline_mode<synchronous>, transform_indices = @transform_5, window_bounds = array<i64: 8, 24>}, {pipeline_mode = #tpu.pipeline_mode<synchronous>, transform_indices = @transform_6, window_bounds = array<i64: 8, 1>}, {transform_indices = @transform_7, window_bounds = array<i64: 1, 8, 256>}]} {
    %c0 = arith.constant 0 : index
    %c0_0 = arith.constant 0 : index
    %c0_1 = arith.constant 0 : index
    %c0_2 = arith.constant 0 : index
    %0 = vector.load %arg1[%c0, %c0_0, %c0_1, %c0_2] : memref<1x16x16x4xbf16, #tpu.memory_space<vmem>>, vector<1x16x16x4xbf16>
    %1 = vector.shape_cast %0 : vector<1x16x16x4xbf16> to vector<16x16x4xbf16>
    %2 = vector.shape_cast %1 : vector<16x16x4xbf16> to vector<256x4xbf16>
    %c0_3 = arith.constant 0 : index
    %c0_4 = arith.constant 0 : index
    %3 = vector.load %arg2[%c0_3, %c0_4] : memref<4x24xbf16, #tpu.memory_space<vmem>>, vector<4x24xbf16>
    %cst = arith.constant dense<0.000000e+00> : vector<256x24xf32>
    %4 = tpu.matmul %2, %3, %cst {dimension_numbers = #tpu.dot_dimension_numbers<[1], [0], [0], [1], [0, 0, 1, 1], [], []>} : vector<256x4xbf16>, vector<4x24xbf16>, vector<256x24xf32> -> vector<256x24xf32>
    %c0_5 = arith.constant 0 : index
    %c0_6 = arith.constant 0 : index
    %5 = vector.load %arg3[%c0_5, %c0_6] : memref<1x24xf32, #tpu.memory_space<vmem>>, vector<1x24xf32>
    %6 = vector.broadcast %5 : vector<1x24xf32> to vector<256x24xf32>
    %7 = arith.addf %4, %6 : vector<256x24xf32>
    %cst_7 = arith.constant 0.000000e+00 : f32
    %cst_8 = arith.constant 6.000000e+00 : f32
    %8 = vector.broadcast %cst_7 : f32 to vector<256x24xf32>
    %9 = arith.maximumf %8, %7 : vector<256x24xf32>
    %10 = vector.broadcast %cst_8 : f32 to vector<256x24xf32>
    %11 = arith.minimumf %10, %9 : vector<256x24xf32>
    %12 = vector.shape_cast %11 : vector<256x24xf32> to vector<16x16x24xf32>
    %cst_9 = arith.constant 0.000000e+00 : f32
    %13 = vector.broadcast %cst_9 : f32 to vector<1x18x24xf32>
    %c0_10 = arith.constant 0 : index
    %c0_11 = arith.constant 0 : index
    %c0_12 = arith.constant 0 : index
    %14 = vector.load %arg9[%c0_10, %c0_11, %c0_12] : memref<18x18x24xf32, #tpu.memory_space<vmem>>, vector<1x18x24xf32>
    tpu.vector_store %arg9[%c0_10, %c0_11, %c0_12], %13 {strides = array<i32>} : memref<18x18x24xf32, #tpu.memory_space<vmem>>, vector<1x18x24xf32>,
    %cst_13 = arith.constant 0.000000e+00 : f32
    %15 = vector.broadcast %cst_13 : f32 to vector<1x18x24xf32>
    %c17 = arith.constant 17 : index
    %c0_14 = arith.constant 0 : index
    %c0_15 = arith.constant 0 : index
    %16 = vector.load %arg9[%c17, %c0_14, %c0_15] : memref<18x18x24xf32, #tpu.memory_space<vmem>>, vector<1x18x24xf32>
    tpu.vector_store %arg9[%c17, %c0_14, %c0_15], %15 {strides = array<i32>} : memref<18x18x24xf32, #tpu.memory_space<vmem>>, vector<1x18x24xf32>,
    %cst_16 = arith.constant 0.000000e+00 : f32
    %17 = vector.broadcast %cst_16 : f32 to vector<16x1x24xf32>
    %c1 = arith.constant 1 : index
    %c0_17 = arith.constant 0 : index
    %c0_18 = arith.constant 0 : index
    %18 = vector.load %arg9[%c1, %c0_17, %c0_18] : memref<18x18x24xf32, #tpu.memory_space<vmem>>, vector<16x1x24xf32>
    tpu.vector_store %arg9[%c1, %c0_17, %c0_18], %17 {strides = array<i32>} : memref<18x18x24xf32, #tpu.memory_space<vmem>>, vector<16x1x24xf32>,
    %cst_19 = arith.constant 0.000000e+00 : f32
    %19 = vector.broadcast %cst_19 : f32 to vector<16x1x24xf32>
    %c1_20 = arith.constant 1 : index
    %c17_21 = arith.constant 17 : index
    %c0_22 = arith.constant 0 : index
    %20 = vector.load %arg9[%c1_20, %c17_21, %c0_22] : memref<18x18x24xf32, #tpu.memory_space<vmem>>, vector<16x1x24xf32>
    tpu.vector_store %arg9[%c1_20, %c17_21, %c0_22], %19 {strides = array<i32>} : memref<18x18x24xf32, #tpu.memory_space<vmem>>, vector<16x1x24xf32>,
    %c1_23 = arith.constant 1 : index
    %c1_24 = arith.constant 1 : index
    %c0_25 = arith.constant 0 : index
    %21 = vector.load %arg9[%c1_23, %c1_24, %c0_25] : memref<18x18x24xf32, #tpu.memory_space<vmem>>, vector<16x16x24xf32>
    tpu.vector_store %arg9[%c1_23, %c1_24, %c0_25], %12 {strides = array<i32>} : memref<18x18x24xf32, #tpu.memory_space<vmem>>, vector<16x16x24xf32>,
    %c0_26 = arith.constant 0 : index
    %c0_27 = arith.constant 0 : index
    %22 = vector.load %arg4[%c0_26, %c0_27] : memref<9x24xbf16, #tpu.memory_space<vmem>>, vector<9x24xbf16>
    %23 = arith.extf %22 : vector<9x24xbf16> to vector<9x24xf32>
    %c0_28 = arith.constant 0 : index
    %c0_29 = arith.constant 0 : index
    %24 = vector.load %arg5[%c0_28, %c0_29] : memref<1x24xf32, #tpu.memory_space<vmem>>, vector<1x24xf32>
    %cst_30 = arith.constant 0.000000e+00 : f32
    %25 = vector.broadcast %cst_30 : f32 to vector<16x16x24xf32>
    %c0_31 = arith.constant 0 : index
    %c0_32 = arith.constant 0 : index
    %c0_33 = arith.constant 0 : index
    %26 = vector.load %arg9[%c0_31, %c0_32, %c0_33] : memref<18x18x24xf32, #tpu.memory_space<vmem>>, vector<16x16x24xf32>
    %27 = vector.extract_strided_slice %23 {offsets = [0, 0], sizes = [1, 24], strides = [1, 1]} : vector<9x24xf32> to vector<1x24xf32>
    %28 = vector.shape_cast %27 : vector<1x24xf32> to vector<24xf32>
    %29 = vector.shape_cast %28 : vector<24xf32> to vector<1x1x24xf32>
    %30 = vector.broadcast %29 : vector<1x1x24xf32> to vector<16x16x24xf32>
    %31 = arith.mulf %26, %30 : vector<16x16x24xf32>
    %32 = arith.addf %25, %31 : vector<16x16x24xf32>
    %c0_34 = arith.constant 0 : index
    %c1_35 = arith.constant 1 : index
    %c0_36 = arith.constant 0 : index
    %33 = vector.load %arg9[%c0_34, %c1_35, %c0_36] : memref<18x18x24xf32, #tpu.memory_space<vmem>>, vector<16x16x24xf32>
    %34 = vector.extract_strided_slice %23 {offsets = [1, 0], sizes = [1, 24], strides = [1, 1]} : vector<9x24xf32> to vector<1x24xf32>
    %35 = vector.shape_cast %34 : vector<1x24xf32> to vector<24xf32>
    %36 = vector.shape_cast %35 : vector<24xf32> to vector<1x1x24xf32>
    %37 = vector.broadcast %36 : vector<1x1x24xf32> to vector<16x16x24xf32>
    %38 = arith.mulf %33, %37 : vector<16x16x24xf32>
    %39 = arith.addf %32, %38 : vector<16x16x24xf32>
    %c0_37 = arith.constant 0 : index
    %c2 = arith.constant 2 : index
    %c0_38 = arith.constant 0 : index
    %40 = vector.load %arg9[%c0_37, %c2, %c0_38] : memref<18x18x24xf32, #tpu.memory_space<vmem>>, vector<16x16x24xf32>
    %41 = vector.extract_strided_slice %23 {offsets = [2, 0], sizes = [1, 24], strides = [1, 1]} : vector<9x24xf32> to vector<1x24xf32>
    %42 = vector.shape_cast %41 : vector<1x24xf32> to vector<24xf32>
    %43 = vector.shape_cast %42 : vector<24xf32> to vector<1x1x24xf32>
    %44 = vector.broadcast %43 : vector<1x1x24xf32> to vector<16x16x24xf32>
    %45 = arith.mulf %40, %44 : vector<16x16x24xf32>
    %46 = arith.addf %39, %45 : vector<16x16x24xf32>
    %c1_39 = arith.constant 1 : index
    %c0_40 = arith.constant 0 : index
    %c0_41 = arith.constant 0 : index
    %47 = vector.load %arg9[%c1_39, %c0_40, %c0_41] : memref<18x18x24xf32, #tpu.memory_space<vmem>>, vector<16x16x24xf32>
    %48 = vector.extract_strided_slice %23 {offsets = [3, 0], sizes = [1, 24], strides = [1, 1]} : vector<9x24xf32> to vector<1x24xf32>
    %49 = vector.shape_cast %48 : vector<1x24xf32> to vector<24xf32>
    %50 = vector.shape_cast %49 : vector<24xf32> to vector<1x1x24xf32>
    %51 = vector.broadcast %50 : vector<1x1x24xf32> to vector<16x16x24xf32>
    %52 = arith.mulf %47, %51 : vector<16x16x24xf32>
    %53 = arith.addf %46, %52 : vector<16x16x24xf32>
    %c1_42 = arith.constant 1 : index
    %c1_43 = arith.constant 1 : index
    %c0_44 = arith.constant 0 : index
    %54 = vector.load %arg9[%c1_42, %c1_43, %c0_44] : memref<18x18x24xf32, #tpu.memory_space<vmem>>, vector<16x16x24xf32>
    %55 = vector.extract_strided_slice %23 {offsets = [4, 0], sizes = [1, 24], strides = [1, 1]} : vector<9x24xf32> to vector<1x24xf32>
    %56 = vector.shape_cast %55 : vector<1x24xf32> to vector<24xf32>
    %57 = vector.shape_cast %56 : vector<24xf32> to vector<1x1x24xf32>
    %58 = vector.broadcast %57 : vector<1x1x24xf32> to vector<16x16x24xf32>
    %59 = arith.mulf %54, %58 : vector<16x16x24xf32>
    %60 = arith.addf %53, %59 : vector<16x16x24xf32>
    %c1_45 = arith.constant 1 : index
    %c2_46 = arith.constant 2 : index
    %c0_47 = arith.constant 0 : index
    %61 = vector.load %arg9[%c1_45, %c2_46, %c0_47] : memref<18x18x24xf32, #tpu.memory_space<vmem>>, vector<16x16x24xf32>
    %62 = vector.extract_strided_slice %23 {offsets = [5, 0], sizes = [1, 24], strides = [1, 1]} : vector<9x24xf32> to vector<1x24xf32>
    %63 = vector.shape_cast %62 : vector<1x24xf32> to vector<24xf32>
    %64 = vector.shape_cast %63 : vector<24xf32> to vector<1x1x24xf32>
    %65 = vector.broadcast %64 : vector<1x1x24xf32> to vector<16x16x24xf32>
    %66 = arith.mulf %61, %65 : vector<16x16x24xf32>
    %67 = arith.addf %60, %66 : vector<16x16x24xf32>
    %c2_48 = arith.constant 2 : index
    %c0_49 = arith.constant 0 : index
    %c0_50 = arith.constant 0 : index
    %68 = vector.load %arg9[%c2_48, %c0_49, %c0_50] : memref<18x18x24xf32, #tpu.memory_space<vmem>>, vector<16x16x24xf32>
    %69 = vector.extract_strided_slice %23 {offsets = [6, 0], sizes = [1, 24], strides = [1, 1]} : vector<9x24xf32> to vector<1x24xf32>
    %70 = vector.shape_cast %69 : vector<1x24xf32> to vector<24xf32>
    %71 = vector.shape_cast %70 : vector<24xf32> to vector<1x1x24xf32>
    %72 = vector.broadcast %71 : vector<1x1x24xf32> to vector<16x16x24xf32>
    %73 = arith.mulf %68, %72 : vector<16x16x24xf32>
    %74 = arith.addf %67, %73 : vector<16x16x24xf32>
    %c2_51 = arith.constant 2 : index
    %c1_52 = arith.constant 1 : index
    %c0_53 = arith.constant 0 : index
    %75 = vector.load %arg9[%c2_51, %c1_52, %c0_53] : memref<18x18x24xf32, #tpu.memory_space<vmem>>, vector<16x16x24xf32>
    %76 = vector.extract_strided_slice %23 {offsets = [7, 0], sizes = [1, 24], strides = [1, 1]} : vector<9x24xf32> to vector<1x24xf32>
    %77 = vector.shape_cast %76 : vector<1x24xf32> to vector<24xf32>
    %78 = vector.shape_cast %77 : vector<24xf32> to vector<1x1x24xf32>
    %79 = vector.broadcast %78 : vector<1x1x24xf32> to vector<16x16x24xf32>
    %80 = arith.mulf %75, %79 : vector<16x16x24xf32>
    %81 = arith.addf %74, %80 : vector<16x16x24xf32>
    %c2_54 = arith.constant 2 : index
    %c2_55 = arith.constant 2 : index
    %c0_56 = arith.constant 0 : index
    %82 = vector.load %arg9[%c2_54, %c2_55, %c0_56] : memref<18x18x24xf32, #tpu.memory_space<vmem>>, vector<16x16x24xf32>
    %83 = vector.extract_strided_slice %23 {offsets = [8, 0], sizes = [1, 24], strides = [1, 1]} : vector<9x24xf32> to vector<1x24xf32>
    %84 = vector.shape_cast %83 : vector<1x24xf32> to vector<24xf32>
    %85 = vector.shape_cast %84 : vector<24xf32> to vector<1x1x24xf32>
    %86 = vector.broadcast %85 : vector<1x1x24xf32> to vector<16x16x24xf32>
    %87 = arith.mulf %82, %86 : vector<16x16x24xf32>
    %88 = arith.addf %81, %87 : vector<16x16x24xf32>
    %89 = vector.shape_cast %24 : vector<1x24xf32> to vector<1x1x24xf32>
    %90 = vector.broadcast %89 : vector<1x1x24xf32> to vector<16x16x24xf32>
    %91 = arith.addf %88, %90 : vector<16x16x24xf32>
    %cst_57 = arith.constant 0.000000e+00 : f32
    %cst_58 = arith.constant 6.000000e+00 : f32
    %92 = vector.broadcast %cst_57 : f32 to vector<16x16x24xf32>
    %93 = arith.maximumf %92, %91 : vector<16x16x24xf32>
    %94 = vector.broadcast %cst_58 : f32 to vector<16x16x24xf32>
    %95 = arith.minimumf %94, %93 : vector<16x16x24xf32>
    %96 = vector.shape_cast %95 : vector<16x16x24xf32> to vector<256x24xf32>
    %c0_59 = arith.constant 0 : index
    %c0_60 = arith.constant 0 : index
    %97 = vector.load %arg6[%c0_59, %c0_60] : memref<8x24xf32, #tpu.memory_space<vmem>>, vector<8x24xf32>
    %cst_61 = arith.constant dense<0.000000e+00> : vector<8x256xf32>
    %98 = tpu.matmul %97, %96, %cst_61 {dimension_numbers = #tpu.dot_dimension_numbers<[1], [1], [0], [0], [0, 0, 1, 0], [], []>} : vector<8x24xf32>, vector<256x24xf32>, vector<8x256xf32> -> vector<8x256xf32>
    %c0_62 = arith.constant 0 : index
    %c0_63 = arith.constant 0 : index
    %99 = vector.load %arg7[%c0_62, %c0_63] : memref<8x1xf32, #tpu.memory_space<vmem>>, vector<8x1xf32>
    %100 = vector.broadcast %99 : vector<8x1xf32> to vector<8x256xf32>
    %101 = arith.addf %98, %100 : vector<8x256xf32>
    %c0_64 = arith.constant 0 : index
    %c0_65 = arith.constant 0 : index
    %c0_66 = arith.constant 0 : index
    %102 = vector.load %arg8[%c0_64, %c0_65, %c0_66] : memref<1x8x256xf32, #tpu.memory_space<vmem>>, vector<1x8x256xf32>
    %103 = vector.shape_cast %102 : vector<1x8x256xf32> to vector<8x256xf32>
    %104 = vector.shape_cast %101 : vector<8x256xf32> to vector<1x8x256xf32>
    tpu.vector_store %arg8[%c0_64, %c0_65, %c0_66], %104 {strides = array<i32>} : memref<1x8x256xf32, #tpu.memory_space<vmem>>, vector<1x8x256xf32>,
    return
  }
  func.func @transform_0(%arg0: i32) -> (i32, i32, i32, i32) {
    %c0_i32 = arith.constant 0 : i32
    %c0_i32_0 = arith.constant 0 : i32
    %c0_i32_1 = arith.constant 0 : i32
    %c0_i32_2 = arith.constant 0 : i32
    return %arg0, %c0_i32, %c0_i32_0, %c0_i32_1 : i32, i32, i32, i32
  }
  func.func @transform_1(%arg0: i32) -> (i32, i32) {
    %c0_i32 = arith.constant 0 : i32
    %c0_i32_0 = arith.constant 0 : i32
    %c0_i32_1 = arith.constant 0 : i32
    return %c0_i32, %c0_i32_0 : i32, i32
  }
  func.func @transform_2(%arg0: i32) -> (i32, i32) {
    %c0_i32 = arith.constant 0 : i32
    %c0_i32_0 = arith.constant 0 : i32
    %c0_i32_1 = arith.constant 0 : i32
    return %c0_i32, %c0_i32_0 : i32, i32
  }
  func.func @transform_3(%arg0: i32) -> (i32, i32) {
    %c0_i32 = arith.constant 0 : i32
    %c0_i32_0 = arith.constant 0 : i32
    %c0_i32_1 = arith.constant 0 : i32
    return %c0_i32, %c0_i32_0 : i32, i32
  }
  func.func @transform_4(%arg0: i32) -> (i32, i32) {
    %c0_i32 = arith.constant 0 : i32
    %c0_i32_0 = arith.constant 0 : i32
    %c0_i32_1 = arith.constant 0 : i32
    return %c0_i32, %c0_i32_0 : i32, i32
  }
  func.func @transform_5(%arg0: i32) -> (i32, i32) {
    %c0_i32 = arith.constant 0 : i32
    %c0_i32_0 = arith.constant 0 : i32
    %c0_i32_1 = arith.constant 0 : i32
    return %c0_i32, %c0_i32_0 : i32, i32
  }
  func.func @transform_6(%arg0: i32) -> (i32, i32) {
    %c0_i32 = arith.constant 0 : i32
    %c0_i32_0 = arith.constant 0 : i32
    %c0_i32_1 = arith.constant 0 : i32
    return %c0_i32, %c0_i32_0 : i32, i32
  }
  func.func @transform_7(%arg0: i32) -> (i32, i32, i32) {
    %c0_i32 = arith.constant 0 : i32
    %c0_i32_0 = arith.constant 0 : i32
    %c0_i32_1 = arith.constant 0 : i32
    return %arg0, %c0_i32, %c0_i32_0 : i32, i32, i32
  }
}

</mosaic_0001>

<llo_original>
// kernel: tpu_custom_call.1
$region0: #{tpu_custom_call.1}
  #allocation0 [shape = 'u32[]', space=smem, size = 0x4, offset = 0x4, fixed_abs, tag = 'smem constant byte address 0x4 - core index']
  #allocation1 [shape = 'u32[72,128]{1,0:T(1,128)}', space=vmem, size = 0x9000, scoped, tag = 'internal scratch']
  #allocation2 [shape = 'f32[18,18,24]{2,1,0:T(8,128)}', space=vmem, size = 0x36000, scoped, tag = 'scratch operand']
  %s0 = inlined_call_operand.vmem [shape: bf16[2,16,16,4], index: 0, kind: input, shape index: {}]
  %s1 = inlined_call_operand.vmem [shape: bf16[4,24], index: 1, kind: input, shape index: {}]
  %s2 = inlined_call_operand.vmem [shape: f32[1,24], index: 2, kind: input, shape index: {}]
  %s3 = inlined_call_operand.vmem [shape: bf16[9,24], index: 3, kind: input, shape index: {}]
  %s4 = inlined_call_operand.vmem [shape: f32[1,24], index: 4, kind: input, shape index: {}]
  %s5 = inlined_call_operand.vmem [shape: f32[8,24], index: 5, kind: input, shape index: {}]
  %s6 = inlined_call_operand.vmem [shape: f32[8,1], index: 6, kind: input, shape index: {}]
  %s7 = inlined_call_operand.hbm [shape: f32[2,8,256], index: 7, kind: output, shape index: {}]
  %s8 = sld [smem:[#allocation0]]
  $region61: #{tpu_custom_call.1} parent=0
    _
  %s10 = ssub.s32 1, %s8
  %s11 = scalar_select 0, %s10, %s8
  $region1: #{tpu_custom_call.1} parent=0
    #allocation3 [shape = 'u8[16384]{0}', space=vmem, size = 0x4000, scoped, tag = 'output window, operand 0']
    #allocation4 [shape = 's32[2]{0}', space=sflag, size = 0x8, scoped, tag = 'scoped memory for tpu_custom_call.1']
    %12 = vsyncpa [#allocation4], 0
    %s13 = scalar_lea.sflag [#allocation4], 1
    %14 = vsyncpa %s13, 0
    loop: start=0, step=1, limit=4
    $region2: #{tpu_custom_call.1} parent=1 // loop_pre_header
      _
    $region3: #{tpu_custom_call.1} parent=1 // loop_header
      %s16 = sphi 0, %s20
      %p17 = scmp.ge.s32.totalorder %s16, 4
      %s26 = sphi 0, %s28
      %s29 = sphi 0, %s26
      %s30 = sphi 0, %s29
      %s46 = sphi 0, %s30
      %s50 = sphi 0, %s50
      %s52 = sphi 0, %s50
      %s53 = sphi 0, %s52
      %s67 = sphi 0, %s53
      %s71 = sphi 0, %s71
      %s73 = sphi 0, %s71
      %s74 = sphi 0, %s73
      %s88 = sphi 0, %s74
      %s92 = sphi 0, %s92
      %s94 = sphi 0, %s92
      %s95 = sphi 0, %s94
      %s109 = sphi 0, %s95
      %s113 = sphi 0, %s113
      %s115 = sphi 0, %s113
      %s116 = sphi 0, %s115
      %s130 = sphi 0, %s116
      %s134 = sphi 0, %s134
      %s136 = sphi 0, %s134
      %s137 = sphi 0, %s136
      %s151 = sphi 0, %s137
      %s155 = sphi 0, %s155
      %s157 = sphi 0, %s155
      %s158 = sphi 0, %s157
      %s172 = sphi 0, %s158
      %s178 = sphi 0, %s180
      %s181 = sphi 0, %s178
      %s182 = sphi 0, %s181
      %s198 = sphi 0, %s182
    $region4: #{tpu_custom_call.1} parent=1 // loop_header_branch
      %19 = sbr.rel (%p17) target = $region8
    $region5: #{tpu_custom_call.1} parent=1 // loop_body
      %s21 = ssub.s32 %s16, 1
      %s22 = ssub.s32 %s16, 2
      %s23 = sadd.s32 %s16, 1
      %s24 = ssub.s32 %s16, %s23
      %p25 = scmp.eq.s32.totalorder %s24, 0
      %s27 = sadd.s32 %s26, 1
      %s28 = scalar_select %p25, %s26, %s27
      %p31 = pneg %p25
      %p32 = scmp.eq.s32.totalorder %s16, 1
      %p33 = por %p31, %p32
      %p34 = scmp.ne.s32.totalorder %s26, %s29
      %p35 = scmp.eq.s32.totalorder %s16, 0
      %p36 = por %p34, %p35
      %p37 = scmp.ne.s32.totalorder %s26, %s29
      %p38 = scmp.eq.s32.totalorder %s21, 1
      %p39 = por %p37, %p38
      %p40 = scmp.ne.s32.totalorder %s29, %s30
      %p41 = scmp.eq.s32.totalorder %s21, 0
      %p42 = por %p40, %p41
      %p43 = scmp.ne.s32.totalorder %s29, %s30
      %p44 = scmp.eq.s32.totalorder %s22, 1
      %p45 = por %p43, %p44
      %p47 = scmp.ne.s32.totalorder %s30, %s46
      %p48 = scmp.eq.s32.totalorder %s22, 0
      %p49 = por %p47, %p48
      %s51 = sadd.s32 %s50, 1
      %p54 = scmp.eq.s32.totalorder %s16, 1
      %p55 = scmp.ne.s32.totalorder %s50, %s52
      %p56 = scmp.eq.s32.totalorder %s16, 0
      %p57 = por %p55, %p56
      %p58 = scmp.ne.s32.totalorder %s50, %s52
      %p59 = scmp.eq.s32.totalorder %s21, 1
      %p60 = por %p58, %p59
      %p61 = scmp.ne.s32.totalorder %s52, %s53
      %p62 = scmp.eq.s32.totalorder %s21, 0
      %p63 = por %p61, %p62
      %p64 = scmp.ne.s32.totalorder %s52, %s53
      %p65 = scmp.eq.s32.totalorder %s22, 1
      %p66 = por %p64, %p65
      %p68 = scmp.ne.s32.totalorder %s53, %s67
      %p69 = scmp.eq.s32.totalorder %s22, 0
      %p70 = por %p68, %p69
      %s72 = sadd.s32 %s71, 1
      %p75 = scmp.eq.s32.totalorder %s16, 1
      %p76 = scmp.ne.s32.totalorder %s71, %s73
      %p77 = scmp.eq.s32.totalorder %s16, 0
      %p78 = por %p76, %p77
      %p79 = scmp.ne.s32.totalorder %s71, %s73
      %p80 = scmp.eq.s32.totalorder %s21, 1
      %p81 = por %p79, %p80
      %p82 = scmp.ne.s32.totalorder %s73, %s74
      %p83 = scmp.eq.s32.totalorder %s21, 0
      %p84 = por %p82, %p83
      %p85 = scmp.ne.s32.totalorder %s73, %s74
      %p86 = scmp.eq.s32.totalorder %s22, 1
      %p87 = por %p85, %p86
      %p89 = scmp.ne.s32.totalorder %s74, %s88
      %p90 = scmp.eq.s32.totalorder %s22, 0
      %p91 = por %p89, %p90
      %s93 = sadd.s32 %s92, 1
      %p96 = scmp.eq.s32.totalorder %s16, 1
      %p97 = scmp.ne.s32.totalorder %s92, %s94
      %p98 = scmp.eq.s32.totalorder %s16, 0
      %p99 = por %p97, %p98
      %p100 = scmp.ne.s32.totalorder %s92, %s94
      %p101 = scmp.eq.s32.totalorder %s21, 1
      %p102 = por %p100, %p101
      %p103 = scmp.ne.s32.totalorder %s94, %s95
      %p104 = scmp.eq.s32.totalorder %s21, 0
      %p105 = por %p103, %p104
      %p106 = scmp.ne.s32.totalorder %s94, %s95
      %p107 = scmp.eq.s32.totalorder %s22, 1
      %p108 = por %p106, %p107
      %p110 = scmp.ne.s32.totalorder %s95, %s109
      %p111 = scmp.eq.s32.totalorder %s22, 0
      %p112 = por %p110, %p111
      %s114 = sadd.s32 %s113, 1
      %p117 = scmp.eq.s32.totalorder %s16, 1
      %p118 = scmp.ne.s32.totalorder %s113, %s115
      %p119 = scmp.eq.s32.totalorder %s16, 0
      %p120 = por %p118, %p119
      %p121 = scmp.ne.s32.totalorder %s113, %s115
      %p122 = scmp.eq.s32.totalorder %s21, 1
      %p123 = por %p121, %p122
      %p124 = scmp.ne.s32.totalorder %s115, %s116
      %p125 = scmp.eq.s32.totalorder %s21, 0
      %p126 = por %p124, %p125
      %p127 = scmp.ne.s32.totalorder %s115, %s116
      %p128 = scmp.eq.s32.totalorder %s22, 1
      %p129 = por %p127, %p128
      %p131 = scmp.ne.s32.totalorder %s116, %s130
      %p132 = scmp.eq.s32.totalorder %s22, 0
      %p133 = por %p131, %p132
      %s135 = sadd.s32 %s134, 1
      %p138 = scmp.eq.s32.totalorder %s16, 1
      %p139 = scmp.ne.s32.totalorder %s134, %s136
      %p140 = scmp.eq.s32.totalorder %s16, 0
      %p141 = por %p139, %p140
      %p142 = scmp.ne.s32.totalorder %s134, %s136
      %p143 = scmp.eq.s32.totalorder %s21, 1
      %p144 = por %p142, %p143
      %p145 = scmp.ne.s32.totalorder %s136, %s137
      %p146 = scmp.eq.s32.totalorder %s21, 0
      %p147 = por %p145, %p146
      %p148 = scmp.ne.s32.totalorder %s136, %s137
      %p149 = scmp.eq.s32.totalorder %s22, 1
      %p150 = por %p148, %p149
      %p152 = scmp.ne.s32.totalorder %s137, %s151
      %p153 = scmp.eq.s32.totalorder %s22, 0
      %p154 = por %p152, %p153
      %s156 = sadd.s32 %s155, 1
      %p159 = scmp.eq.s32.totalorder %s16, 1
      %p160 = scmp.ne.s32.totalorder %s155, %s157
      %p161 = scmp.eq.s32.totalorder %s16, 0
      %p162 = por %p160, %p161
      %p163 = scmp.ne.s32.totalorder %s155, %s157
      %p164 = scmp.eq.s32.totalorder %s21, 1
      %p165 = por %p163, %p164
      %p166 = scmp.ne.s32.totalorder %s157, %s158
      %p167 = scmp.eq.s32.totalorder %s21, 0
      %p168 = por %p166, %p167
      %p169 = scmp.ne.s32.totalorder %s157, %s158
      %p170 = scmp.eq.s32.totalorder %s22, 1
      %p171 = por %p169, %p170
      %p173 = scmp.ne.s32.totalorder %s158, %s172
      %p174 = scmp.eq.s32.totalorder %s22, 0
      %p175 = por %p173, %p174
      %s176 = ssub.s32 %s16, %s23
      %p177 = scmp.eq.s32.totalorder %s176, 0
      %s179 = sadd.s32 %s178, 1
      %s180 = scalar_select %p177, %s178, %s179
      %p183 = pneg %p177
      %p184 = scmp.eq.s32.totalorder %s16, 1
      %p185 = por %p183, %p184
      %p186 = scmp.ne.s32.totalorder %s178, %s181
      %p187 = scmp.eq.s32.totalorder %s16, 0
      %p188 = por %p186, %p187
      %p189 = scmp.ne.s32.totalorder %s178, %s181
      %p190 = scmp.eq.s32.totalorder %s21, 1
      %p191 = por %p189, %p190
      %p192 = scmp.ne.s32.totalorder %s181, %s182
      %p193 = scmp.eq.s32.totalorder %s21, 0
      %p194 = por %p192, %p193
      %p195 = scmp.ne.s32.totalorder %s181, %s182
      %p196 = scmp.eq.s32.totalorder %s22, 1
      %p197 = por %p195, %p196
      %p199 = scmp.ne.s32.totalorder %s182, %s198
      %p200 = scmp.eq.s32.totalorder %s22, 0
      %p201 = por %p199, %p200
      %p202 = scmp.le.s32.totalorder 1, %s16
      %p203 = scmp.lt.s32.totalorder %s16, 3
      %p204 = pnand %p202, %p203
      %p205 = pneg %p204
      // Predicated region
      $region9: #{tpu_custom_call.1} parent=5 // pred_check
        _
      $region10: #{tpu_custom_call.1} parent=5 // pred_check_branch
        %207 = sbr.rel (%p204) target = $region12
      $region11: #{tpu_custom_call.1} parent=5 // pred_region
        %s208 = ssub.s32 %s16, 1
        // Predicated region
        $region13: #{tpu_custom_call.1} parent=11 // pred_check
          %p209 = pneg %p63
        $region14: #{tpu_custom_call.1} parent=11 // pred_check_branch
          %211 = sbr.rel (%p209) target = $region16
        $region15: #{tpu_custom_call.1} parent=11 // pred_region
          _
        $region16: #{tpu_custom_call.1} parent=11 // pred_fallthru
          _
        // Predicated region
        $region17: #{tpu_custom_call.1} parent=11 // pred_check
          %p212 = pneg %p84
        $region18: #{tpu_custom_call.1} parent=11 // pred_check_branch
          %214 = sbr.rel (%p212) target = $region20
        $region19: #{tpu_custom_call.1} parent=11 // pred_region
          _
        $region20: #{tpu_custom_call.1} parent=11 // pred_fallthru
          _
        // Predicated region
        $region21: #{tpu_custom_call.1} parent=11 // pred_check
          %p215 = pneg %p105
        $region22: #{tpu_custom_call.1} parent=11 // pred_check_branch
          %217 = sbr.rel (%p215) target = $region24
        $region23: #{tpu_custom_call.1} parent=11 // pred_region
          _
        $region24: #{tpu_custom_call.1} parent=11 // pred_fallthru
          _
        // Predicated region
        $region25: #{tpu_custom_call.1} parent=11 // pred_check
          %p218 = pneg %p126
        $region26: #{tpu_custom_call.1} parent=11 // pred_check_branch
          %220 = sbr.rel (%p218) target = $region28
        $region27: #{tpu_custom_call.1} parent=11 // pred_region
          _
        $region28: #{tpu_custom_call.1} parent=11 // pred_fallthru
          _
        // Predicated region
        $region29: #{tpu_custom_call.1} parent=11 // pred_check
          %p221 = pneg %p147
        $region30: #{tpu_custom_call.1} parent=11 // pred_check_branch
          %223 = sbr.rel (%p221) target = $region32
        $region31: #{tpu_custom_call.1} parent=11 // pred_region
          _
        $region32: #{tpu_custom_call.1} parent=11 // pred_fallthru
          _
        // Predicated region
        $region33: #{tpu_custom_call.1} parent=11 // pred_check
          %p224 = pneg %p168
        $region34: #{tpu_custom_call.1} parent=11 // pred_check_branch
          %226 = sbr.rel (%p224) target = $region36
        $region35: #{tpu_custom_call.1} parent=11 // pred_region
          _
        $region36: #{tpu_custom_call.1} parent=11 // pred_fallthru
          _
      $region12: #{tpu_custom_call.1} parent=5 // pred_fallthru
        _
      %p227 = scmp.lt.s32.totalorder %s16, 2
      // Predicated region
      $region37: #{tpu_custom_call.1} parent=5 // pred_check
        %p228 = pneg %p227
      $region38: #{tpu_custom_call.1} parent=5 // pred_check_branch
        %230 = sbr.rel (%p228) target = $region40
      $region39: #{tpu_custom_call.1} parent=5 // pred_region
        // Predicated region
        $region41: #{tpu_custom_call.1} parent=39 // pred_check
          %p231 = pneg %p36
        $region42: #{tpu_custom_call.1} parent=39 // pred_check_branch
          %233 = sbr.rel (%p231) target = $region44
        $region43: #{tpu_custom_call.1} parent=39 // pred_region
          %p234 = scmp.lt.s32.totalorder %s16, 1
          %s235 = scalar_select %p234, %s16, 1
          %s236 = smul.addr %s235, 32
          %s237 = smul.addr %s236, 4
          %s238 = scalar_lea.vmem %s0, %s237
        $region44: #{tpu_custom_call.1} parent=39 // pred_fallthru
          _
      $region40: #{tpu_custom_call.1} parent=5 // pred_fallthru
        _
      %p239 = scmp.le.s32.totalorder 1, %s16
      %p240 = scmp.lt.s32.totalorder %s16, 3
      %p241 = pnand %p239, %p240
      %p242 = pneg %p241
      // Predicated region
      $region45: #{tpu_custom_call.1} parent=5 // pred_check
        _
      $region46: #{tpu_custom_call.1} parent=5 // pred_check_branch
        %244 = sbr.rel (%p241) target = $region48
      $region47: #{tpu_custom_call.1} parent=5 // pred_region
        %s245 = ssub.s32 %s16, 1
        %p246 = scmp.lt.s32.totalorder %s21, 1
        %s247 = scalar_select %p246, %s21, 1
        %s248 = smul.addr %s247, 32
        %s249 = smul.addr %s248, 4
        %s250 = scalar_lea.vmem %s0, %s249
        %p251 = pneg %p42
        %p252 = pneg %p39
        %p253 = pneg %p63
        %p254 = pneg %p60
        %p255 = pneg %p84
        %p256 = pneg %p81
        %p257 = pneg %p105
        %p258 = pneg %p102
        %p259 = pneg %p126
        %p260 = pneg %p123
        %p261 = pneg %p147
        %p262 = pneg %p144
        %p263 = pneg %p168
        %p264 = pneg %p165
        %p265 = pneg %p194
        %p266 = pneg %p191
        %s267 = sand.u32 %s181, 1
        %s268 = scalar_lea.sflag [#allocation4], %s267
        %s269 = sand.u32 %s181, 1
        %s270 = smul.addr %s269, 16
        %s271 = scalar_lea.vmem [#allocation3], %s270
        %p272 = scmp.lt.s32.totalorder %s21, 1
        %s273 = scalar_select %p272, %s21, 1
        %s274 = smul.addr %s273, 32
        %s275 = smul.addr %s274, 4
        %s276 = scalar_lea.vmem %s0, %s275
        %v278 = vld [vmem:[%s276] sm:$0xf]
        %v279 = vld [vmem:[%s276 + $0x4] sm:$0xf]
        %v280 = vld [vmem:[%s276 + $0x8] sm:$0xf]
        %v281 = vld [vmem:[%s276 + $0xc] sm:$0xf]
        %v282 = vld [vmem:[%s276 + $0x10] sm:$0xf]
        %v283 = vld [vmem:[%s276 + $0x14] sm:$0xf]
        %v284 = vld [vmem:[%s276 + $0x18] sm:$0xf]
        %v285 = vld [vmem:[%s276 + $0x1c] sm:$0xf]
        %v286 = vld [vmem:[%s276 + $0x20] sm:$0xf]
        %v287 = vld [vmem:[%s276 + $0x24] sm:$0xf]
        %v288 = vld [vmem:[%s276 + $0x28] sm:$0xf]
        %v289 = vld [vmem:[%s276 + $0x2c] sm:$0xf]
        %v290 = vld [vmem:[%s276 + $0x30] sm:$0xf]
        %v291 = vld [vmem:[%s276 + $0x34] sm:$0xf]
        %v292 = vld [vmem:[%s276 + $0x38] sm:$0xf]
        %v293 = vld [vmem:[%s276 + $0x3c] sm:$0xf]
        %v294 = vld [vmem:[%s276 + $0x40] sm:$0xf]
        %v295 = vld [vmem:[%s276 + $0x44] sm:$0xf]
        %v296 = vld [vmem:[%s276 + $0x48] sm:$0xf]
        %v297 = vld [vmem:[%s276 + $0x4c] sm:$0xf]
        %v298 = vld [vmem:[%s276 + $0x50] sm:$0xf]
        %v299 = vld [vmem:[%s276 + $0x54] sm:$0xf]
        %v300 = vld [vmem:[%s276 + $0x58] sm:$0xf]
        %v301 = vld [vmem:[%s276 + $0x5c] sm:$0xf]
        %v302 = vld [vmem:[%s276 + $0x60] sm:$0xf]
        %v303 = vld [vmem:[%s276 + $0x64] sm:$0xf]
        %v304 = vld [vmem:[%s276 + $0x68] sm:$0xf]
        %v305 = vld [vmem:[%s276 + $0x6c] sm:$0xf]
        %v306 = vld [vmem:[%s276 + $0x70] sm:$0xf]
        %v307 = vld [vmem:[%s276 + $0x74] sm:$0xf]
        %v308 = vld [vmem:[%s276 + $0x78] sm:$0xf]
        %v309 = vld [vmem:[%s276 + $0x7c] sm:$0xf]
        %v310 = vld [vmem:[%s1] sm:$0x3]
        %v311 = vld [vmem:[%s2] sm:$0x1]
        %v313 = vperm.slane %v311, 0
        %v347 = vunpack.c.l.b16 %v278
        %v348 = vunpack.c.l.b16 %v279
        %v349 = vunpack.c.l.b16 %v280
        %v350 = vunpack.c.l.b16 %v281
        %v351 = vunpack.c.l.b16 %v282
        %v352 = vunpack.c.l.b16 %v283
        %v353 = vunpack.c.l.b16 %v284
        %v354 = vunpack.c.l.b16 %v285
        %v355 = vunpack.c.l.b16 %v286
        %v356 = vunpack.c.l.b16 %v287
        %v357 = vunpack.c.l.b16 %v288
        %v358 = vunpack.c.l.b16 %v289
        %v359 = vunpack.c.l.b16 %v290
        %v360 = vunpack.c.l.b16 %v291
        %v361 = vunpack.c.l.b16 %v292
        %v362 = vunpack.c.l.b16 %v293
        %v363 = vunpack.c.l.b16 %v294
        %v364 = vunpack.c.l.b16 %v295
        %v365 = vunpack.c.l.b16 %v296
        %v366 = vunpack.c.l.b16 %v297
        %v367 = vunpack.c.l.b16 %v298
        %v368 = vunpack.c.l.b16 %v299
        %v369 = vunpack.c.l.b16 %v300
        %v370 = vunpack.c.l.b16 %v301
        %v371 = vunpack.c.l.b16 %v302
        %v372 = vunpack.c.l.b16 %v303
        %v373 = vunpack.c.l.b16 %v304
        %v374 = vunpack.c.l.b16 %v305
        %v375 = vunpack.c.l.b16 %v306
        %v376 = vunpack.c.l.b16 %v307
        %v377 = vunpack.c.l.b16 %v308
        %v378 = vunpack.c.l.b16 %v309
        %v379 = vpack.c.b16 %v348, %v347
        %v380 = vpack.c.b16 %v350, %v349
        %v381 = vpack.c.b16 %v352, %v351
        %v382 = vpack.c.b16 %v354, %v353
        %v383 = vpack.c.b16 %v356, %v355
        %v384 = vpack.c.b16 %v358, %v357
        %v385 = vpack.c.b16 %v360, %v359
        %v386 = vpack.c.b16 %v362, %v361
        %v387 = vpack.c.b16 %v364, %v363
        %v388 = vpack.c.b16 %v366, %v365
        %v389 = vpack.c.b16 %v368, %v367
        %v390 = vpack.c.b16 %v370, %v369
        %v391 = vpack.c.b16 %v372, %v371
        %v392 = vpack.c.b16 %v374, %v373
        %v393 = vpack.c.b16 %v376, %v375
        %v394 = vpack.c.b16 %v378, %v377
        %vm395 = vcmask 31744
        %v397 = vsel %vm395, %v379, 0
        %v400 = vsel %vm395, %v380, 0
        %v403 = vsel %vm395, %v381, 0
        %v406 = vsel %vm395, %v382, 0
        %v409 = vsel %vm395, %v383, 0
        %v412 = vsel %vm395, %v384, 0
        %v415 = vsel %vm395, %v385, 0
        %v418 = vsel %vm395, %v386, 0
        %v421 = vsel %vm395, %v387, 0
        %v424 = vsel %vm395, %v388, 0
        %v427 = vsel %vm395, %v389, 0
        %v430 = vsel %vm395, %v390, 0
        %v433 = vsel %vm395, %v391, 0
        %v436 = vsel %vm395, %v392, 0
        %v439 = vsel %vm395, %v393, 0
        %v442 = vsel %vm395, %v394, 0
        %vm444 = vcmask 1041408
        %v446 = vsel %vm444, %v310, 0
        %448 = vmatpush.bf16.msra.mxu0 0
        %449 = vmatpush.bf16.msra.mxu0 0
        %450 = vmatpush.bf16.msra.mxu0 0
        %451 = vmatpush.bf16.msra.mxu0 0
        %452 = vmatpush.bf16.msra.mxu0 0
        %453 = vmatpush.bf16.msra.mxu0 0
        %454 = vmatpush.bf16.msra.mxu0 0
        %455 = vmatpush.bf16.msra.mxu0 %v446
        %456 = vmatmul.bf16.gmra.mxu0 %v397
        %v457 = vpop.f32.mrf.mxu0
        %v458 = vadd.f32 %v313, %v457
        %v459 = vpop.f32.mrf.mxu0
        %v460 = vadd.f32 %v313, %v459
        %461 = vmatmul.bf16.gmra.mxu0 %v400
        %v462 = vpop.f32.mrf.mxu0
        %v463 = vadd.f32 %v313, %v462
        %v464 = vpop.f32.mrf.mxu0
        %v465 = vadd.f32 %v313, %v464
        %466 = vmatmul.bf16.gmra.mxu0 %v403
        %v467 = vpop.f32.mrf.mxu0
        %v468 = vadd.f32 %v313, %v467
        %v469 = vpop.f32.mrf.mxu0
        %v470 = vadd.f32 %v313, %v469
        %471 = vmatmul.bf16.gmra.mxu0 %v406
        %v472 = vpop.f32.mrf.mxu0
        %v473 = vadd.f32 %v313, %v472
        %v474 = vpop.f32.mrf.mxu0
        %v475 = vadd.f32 %v313, %v474
        %476 = vmatmul.bf16.gmra.mxu0 %v409
        %v477 = vpop.f32.mrf.mxu0
        %v478 = vadd.f32 %v313, %v477
        %v479 = vpop.f32.mrf.mxu0
        %v480 = vadd.f32 %v313, %v479
        %481 = vmatmul.bf16.gmra.mxu0 %v412
        %v482 = vpop.f32.mrf.mxu0
        %v483 = vadd.f32 %v313, %v482
        %v484 = vpop.f32.mrf.mxu0
        %v485 = vadd.f32 %v313, %v484
        %486 = vmatmul.bf16.gmra.mxu0 %v415
        %v487 = vpop.f32.mrf.mxu0
        %v488 = vadd.f32 %v313, %v487
        %v489 = vpop.f32.mrf.mxu0
        %v490 = vadd.f32 %v313, %v489
        %491 = vmatmul.bf16.gmra.mxu0 %v418
        %v492 = vpop.f32.mrf.mxu0
        %v493 = vadd.f32 %v313, %v492
        %v494 = vpop.f32.mrf.mxu0
        %v495 = vadd.f32 %v313, %v494
        %496 = vmatmul.bf16.gmra.mxu0 %v421
        %v497 = vpop.f32.mrf.mxu0
        %v498 = vadd.f32 %v313, %v497
        %v499 = vpop.f32.mrf.mxu0
        %v500 = vadd.f32 %v313, %v499
        %501 = vmatmul.bf16.gmra.mxu0 %v424
        %v502 = vpop.f32.mrf.mxu0
        %v503 = vadd.f32 %v313, %v502
        %v504 = vpop.f32.mrf.mxu0
        %v505 = vadd.f32 %v313, %v504
        %506 = vmatmul.bf16.gmra.mxu0 %v427
        %v507 = vpop.f32.mrf.mxu0
        %v508 = vadd.f32 %v313, %v507
        %v509 = vpop.f32.mrf.mxu0
        %v510 = vadd.f32 %v313, %v509
        %511 = vmatmul.bf16.gmra.mxu0 %v430
        %v512 = vpop.f32.mrf.mxu0
        %v513 = vadd.f32 %v313, %v512
        %v514 = vpop.f32.mrf.mxu0
        %v515 = vadd.f32 %v313, %v514
        %516 = vmatmul.bf16.gmra.mxu0 %v433
        %v517 = vpop.f32.mrf.mxu0
        %v518 = vadd.f32 %v313, %v517
        %v519 = vpop.f32.mrf.mxu0
        %v520 = vadd.f32 %v313, %v519
        %521 = vmatmul.bf16.gmra.mxu0 %v436
        %v522 = vpop.f32.mrf.mxu0
        %v523 = vadd.f32 %v313, %v522
        %v524 = vpop.f32.mrf.mxu0
        %v525 = vadd.f32 %v313, %v524
        %526 = vmatmul.bf16.gmra.mxu0 %v439
        %v527 = vpop.f32.mrf.mxu0
        %v528 = vadd.f32 %v313, %v527
        %v529 = vpop.f32.mrf.mxu0
        %v530 = vadd.f32 %v313, %v529
        %531 = vmatmul.bf16.gmra.mxu0 %v442
        %v532 = vpop.f32.mrf.mxu0
        %v533 = vadd.f32 %v313, %v532
        %v534 = vpop.f32.mrf.mxu0
        %v535 = vadd.f32 %v313, %v534
        %536 = vdwg.mxu0
        %v537 = vmax.f32 %v458, 0.0
        %v538 = vmax.f32 %v460, 0.0
        %v539 = vmax.f32 %v463, 0.0
        %v540 = vmax.f32 %v465, 0.0
        %v541 = vmax.f32 %v468, 0.0
        %v542 = vmax.f32 %v470, 0.0
        %v543 = vmax.f32 %v473, 0.0
        %v544 = vmax.f32 %v475, 0.0
        %v545 = vmax.f32 %v478, 0.0
        %v546 = vmax.f32 %v480, 0.0
        %v547 = vmax.f32 %v483, 0.0
        %v548 = vmax.f32 %v485, 0.0
        %v549 = vmax.f32 %v488, 0.0
        %v550 = vmax.f32 %v490, 0.0
        %v551 = vmax.f32 %v493, 0.0
        %v552 = vmax.f32 %v495, 0.0
        %v553 = vmax.f32 %v498, 0.0
        %v554 = vmax.f32 %v500, 0.0
        %v555 = vmax.f32 %v503, 0.0
        %v556 = vmax.f32 %v505, 0.0
        %v557 = vmax.f32 %v508, 0.0
        %v558 = vmax.f32 %v510, 0.0
        %v559 = vmax.f32 %v513, 0.0
        %v560 = vmax.f32 %v515, 0.0
        %v561 = vmax.f32 %v518, 0.0
        %v562 = vmax.f32 %v520, 0.0
        %v563 = vmax.f32 %v523, 0.0
        %v564 = vmax.f32 %v525, 0.0
        %v565 = vmax.f32 %v528, 0.0
        %v566 = vmax.f32 %v530, 0.0
        %v567 = vmax.f32 %v533, 0.0
        %v568 = vmax.f32 %v535, 0.0
        %v569 = vmin.f32 %v537, 6.0
        %v570 = vmin.f32 %v538, 6.0
        %v571 = vmin.f32 %v539, 6.0
        %v572 = vmin.f32 %v540, 6.0
        %v573 = vmin.f32 %v541, 6.0
        %v574 = vmin.f32 %v542, 6.0
        %v575 = vmin.f32 %v543, 6.0
        %v576 = vmin.f32 %v544, 6.0
        %v577 = vmin.f32 %v545, 6.0
        %v578 = vmin.f32 %v546, 6.0
        %v579 = vmin.f32 %v547, 6.0
        %v580 = vmin.f32 %v548, 6.0
        %v581 = vmin.f32 %v549, 6.0
        %v582 = vmin.f32 %v550, 6.0
        %v583 = vmin.f32 %v551, 6.0
        %v584 = vmin.f32 %v552, 6.0
        %v585 = vmin.f32 %v553, 6.0
        %v586 = vmin.f32 %v554, 6.0
        %v587 = vmin.f32 %v555, 6.0
        %v588 = vmin.f32 %v556, 6.0
        %v589 = vmin.f32 %v557, 6.0
        %v590 = vmin.f32 %v558, 6.0
        %v591 = vmin.f32 %v559, 6.0
        %v592 = vmin.f32 %v560, 6.0
        %v593 = vmin.f32 %v561, 6.0
        %v594 = vmin.f32 %v562, 6.0
        %v595 = vmin.f32 %v563, 6.0
        %v596 = vmin.f32 %v564, 6.0
        %v597 = vmin.f32 %v565, 6.0
        %v598 = vmin.f32 %v566, 6.0
        %v599 = vmin.f32 %v567, 6.0
        %v600 = vmin.f32 %v568, 6.0
        %vm601 = vcmask 195584
        %602 = vst.msk [vmem:[#allocation2] sm:$0xff] %vm601, 0.0
        %603 = vst.msk [vmem:[#allocation2 + $0x8] sm:$0xff] %vm601, 0.0
        %vm604 = vcmask 189440
        %605 = vst.msk [vmem:[#allocation2 + $0x10] sm:$0x3] %vm604, 0.0
        %s606 = scalar_lea.vmem [#allocation2], 408
        %607 = vst.msk [vmem:[%s606] sm:$0xff] %vm601, 0.0
        %608 = vst.msk [vmem:[%s606 + $0x8] sm:$0xff] %vm601, 0.0
        %609 = vst.msk [vmem:[%s606 + $0x10] sm:$0x3] %vm604, 0.0
        %s610 = scalar_lea.vmem [#allocation2], 24
        %vm611 = vcmask 188416
        %612 = vst.msk [vmem:[%s610] sm:$0x1] %vm611, 0.0
        %613 = vst.msk [vmem:[%s610 + $0x18] sm:$0x1] %vm611, 0.0
        %614 = vst.msk [vmem:[%s610 + $0x30] sm:$0x1] %vm611, 0.0
        %615 = vst.msk [vmem:[%s610 + $0x48] sm:$0x1] %vm611, 0.0
        %616 = vst.msk [vmem:[%s610 + $0x60] sm:$0x1] %vm611, 0.0
        %617 = vst.msk [vmem:[%s610 + $0x78] sm:$0x1] %vm611, 0.0
        %618 = vst.msk [vmem:[%s610 + $0x90] sm:$0x1] %vm611, 0.0
        %619 = vst.msk [vmem:[%s610 + $0xa8] sm:$0x1] %vm611, 0.0
        %620 = vst.msk [vmem:[%s610 + $0xc0] sm:$0x1] %vm611, 0.0
        %621 = vst.msk [vmem:[%s610 + $0xd8] sm:$0x1] %vm611, 0.0
        %622 = vst.msk [vmem:[%s610 + $0xf0] sm:$0x1] %vm611, 0.0
        %623 = vst.msk [vmem:[%s610 + $0x108] sm:$0x1] %vm611, 0.0
        %624 = vst.msk [vmem:[%s610 + $0x120] sm:$0x1] %vm611, 0.0
        %625 = vst.msk [vmem:[%s610 + $0x138] sm:$0x1] %vm611, 0.0
        %626 = vst.msk [vmem:[%s610 + $0x150] sm:$0x1] %vm611, 0.0
        %627 = vst.msk [vmem:[%s610 + $0x168] sm:$0x1] %vm611, 0.0
        %628 = vst.msk [vmem:[%s610 + $0x11] sm:$0x1] %vm611, 0.0
        %629 = vst.msk [vmem:[%s610 + $0x29] sm:$0x1] %vm611, 0.0
        %630 = vst.msk [vmem:[%s610 + $0x41] sm:$0x1] %vm611, 0.0
        %631 = vst.msk [vmem:[%s610 + $0x59] sm:$0x1] %vm611, 0.0
        %632 = vst.msk [vmem:[%s610 + $0x71] sm:$0x1] %vm611, 0.0
        %633 = vst.msk [vmem:[%s610 + $0x89] sm:$0x1] %vm611, 0.0
        %634 = vst.msk [vmem:[%s610 + $0xa1] sm:$0x1] %vm611, 0.0
        %635 = vst.msk [vmem:[%s610 + $0xb9] sm:$0x1] %vm611, 0.0
        %636 = vst.msk [vmem:[%s610 + $0xd1] sm:$0x1] %vm611, 0.0
        %637 = vst.msk [vmem:[%s610 + $0xe9] sm:$0x1] %vm611, 0.0
        %638 = vst.msk [vmem:[%s610 + $0x101] sm:$0x1] %vm611, 0.0
        %639 = vst.msk [vmem:[%s610 + $0x119] sm:$0x1] %vm611, 0.0
        %640 = vst.msk [vmem:[%s610 + $0x131] sm:$0x1] %vm611, 0.0
        %641 = vst.msk [vmem:[%s610 + $0x149] sm:$0x1] %vm611, 0.0
        %642 = vst.msk [vmem:[%s610 + $0x161] sm:$0x1] %vm611, 0.0
        %643 = vst.msk [vmem:[%s610 + $0x179] sm:$0x1] %vm611, 0.0
        %644 = vst.msk [vmem:[%s610 + $0x1] sm:$0xff] %vm601, %v569
        %645 = vst.msk [vmem:[%s610 + $0x9] sm:$0xff] %vm601, %v570
        %646 = vst.msk [vmem:[%s610 + $0x19] sm:$0xff] %vm601, %v571
        %647 = vst.msk [vmem:[%s610 + $0x21] sm:$0xff] %vm601, %v572
        %648 = vst.msk [vmem:[%s610 + $0x31] sm:$0xff] %vm601, %v573
        %649 = vst.msk [vmem:[%s610 + $0x39] sm:$0xff] %vm601, %v574
        %650 = vst.msk [vmem:[%s610 + $0x49] sm:$0xff] %vm601, %v575
        %651 = vst.msk [vmem:[%s610 + $0x51] sm:$0xff] %vm601, %v576
        %652 = vst.msk [vmem:[%s610 + $0x61] sm:$0xff] %vm601, %v577
        %653 = vst.msk [vmem:[%s610 + $0x69] sm:$0xff] %vm601, %v578
        %654 = vst.msk [vmem:[%s610 + $0x79] sm:$0xff] %vm601, %v579
        %655 = vst.msk [vmem:[%s610 + $0x81] sm:$0xff] %vm601, %v580
        %656 = vst.msk [vmem:[%s610 + $0x91] sm:$0xff] %vm601, %v581
        %657 = vst.msk [vmem:[%s610 + $0x99] sm:$0xff] %vm601, %v582
        %658 = vst.msk [vmem:[%s610 + $0xa9] sm:$0xff] %vm601, %v583
        %659 = vst.msk [vmem:[%s610 + $0xb1] sm:$0xff] %vm601, %v584
        %660 = vst.msk [vmem:[%s610 + $0xc1] sm:$0xff] %vm601, %v585
        %661 = vst.msk [vmem:[%s610 + $0xc9] sm:$0xff] %vm601, %v586
        %662 = vst.msk [vmem:[%s610 + $0xd9] sm:$0xff] %vm601, %v587
        %663 = vst.msk [vmem:[%s610 + $0xe1] sm:$0xff] %vm601, %v588
        %664 = vst.msk [vmem:[%s610 + $0xf1] sm:$0xff] %vm601, %v589
        %665 = vst.msk [vmem:[%s610 + $0xf9] sm:$0xff] %vm601, %v590
        %666 = vst.msk [vmem:[%s610 + $0x109] sm:$0xff] %vm601, %v591
        %667 = vst.msk [vmem:[%s610 + $0x111] sm:$0xff] %vm601, %v592
        %668 = vst.msk [vmem:[%s610 + $0x121] sm:$0xff] %vm601, %v593
        %669 = vst.msk [vmem:[%s610 + $0x129] sm:$0xff] %vm601, %v594
        %670 = vst.msk [vmem:[%s610 + $0x139] sm:$0xff] %vm601, %v595
        %671 = vst.msk [vmem:[%s610 + $0x141] sm:$0xff] %vm601, %v596
        %672 = vst.msk [vmem:[%s610 + $0x151] sm:$0xff] %vm601, %v597
        %673 = vst.msk [vmem:[%s610 + $0x159] sm:$0xff] %vm601, %v598
        %674 = vst.msk [vmem:[%s610 + $0x169] sm:$0xff] %vm601, %v599
        %675 = vst.msk [vmem:[%s610 + $0x171] sm:$0xff] %vm601, %v600
        %v676 = vld [vmem:[%s3] sm:$0xf]
        %v677 = vld [vmem:[%s3 + $0x4] sm:$0x1]
        %v678 = vunpack.c.l.bf16 %v676
        %v679 = vunpack.c.l.bf16 %v677
        %v680 = vld [vmem:[%s4] sm:$0x1]
        %v681 = vld [vmem:[#allocation2] sm:$0xff]
        %v682 = vld [vmem:[#allocation2 + $0x8] sm:$0xff]
        %v683 = vld [vmem:[#allocation2 + $0x18] sm:$0xff]
        %v684 = vld [vmem:[#allocation2 + $0x20] sm:$0xff]
        %v685 = vld [vmem:[#allocation2 + $0x30] sm:$0xff]
        %v686 = vld [vmem:[#allocation2 + $0x38] sm:$0xff]
        %v687 = vld [vmem:[#allocation2 + $0x48] sm:$0xff]
        %v688 = vld [vmem:[#allocation2 + $0x50] sm:$0xff]
        %v689 = vld [vmem:[#allocation2 + $0x60] sm:$0xff]
        %v690 = vld [vmem:[#allocation2 + $0x68] sm:$0xff]
        %v691 = vld [vmem:[#allocation2 + $0x78] sm:$0xff]
        %v692 = vld [vmem:[#allocation2 + $0x80] sm:$0xff]
        %v693 = vld [vmem:[#allocation2 + $0x90] sm:$0xff]
        %v694 = vld [vmem:[#allocation2 + $0x98] sm:$0xff]
        %v695 = vld [vmem:[#allocation2 + $0xa8] sm:$0xff]
        %v696 = vld [vmem:[#allocation2 + $0xb0] sm:$0xff]
        %v697 = vld [vmem:[#allocation2 + $0xc0] sm:$0xff]
        %v698 = vld [vmem:[#allocation2 + $0xc8] sm:$0xff]
        %v699 = vld [vmem:[#allocation2 + $0xd8] sm:$0xff]
        %v700 = vld [vmem:[#allocation2 + $0xe0] sm:$0xff]
        %v701 = vld [vmem:[#allocation2 + $0xf0] sm:$0xff]
        %v702 = vld [vmem:[#allocation2 + $0xf8] sm:$0xff]
        %v703 = vld [vmem:[#allocation2 + $0x108] sm:$0xff]
        %v704 = vld [vmem:[#allocation2 + $0x110] sm:$0xff]
        %v705 = vld [vmem:[#allocation2 + $0x120] sm:$0xff]
        %v706 = vld [vmem:[#allocation2 + $0x128] sm:$0xff]
        %v707 = vld [vmem:[#allocation2 + $0x138] sm:$0xff]
        %v708 = vld [vmem:[#allocation2 + $0x140] sm:$0xff]
        %v709 = vld [vmem:[#allocation2 + $0x150] sm:$0xff]
        %v710 = vld [vmem:[#allocation2 + $0x158] sm:$0xff]
        %v711 = vld [vmem:[#allocation2 + $0x168] sm:$0xff]
        %v712 = vld [vmem:[#allocation2 + $0x170] sm:$0xff]
        %v713 = vperm.slane %v678, 0
        %v714 = vmul.f32 %v681, %v713
        %v715 = vmul.f32 %v682, %v713
        %v716 = vmul.f32 %v683, %v713
        %v717 = vmul.f32 %v684, %v713
        %v718 = vmul.f32 %v685, %v713
        %v719 = vmul.f32 %v686, %v713
        %v720 = vmul.f32 %v687, %v713
        %v721 = vmul.f32 %v688, %v713
        %v722 = vmul.f32 %v689, %v713
        %v723 = vmul.f32 %v690, %v713
        %v724 = vmul.f32 %v691, %v713
        %v725 = vmul.f32 %v692, %v713
        %v726 = vmul.f32 %v693, %v713
        %v727 = vmul.f32 %v694, %v713
        %v728 = vmul.f32 %v695, %v713
        %v729 = vmul.f32 %v696, %v713
        %v730 = vmul.f32 %v697, %v713
        %v731 = vmul.f32 %v698, %v713
        %v732 = vmul.f32 %v699, %v713
        %v733 = vmul.f32 %v700, %v713
        %v734 = vmul.f32 %v701, %v713
        %v735 = vmul.f32 %v702, %v713
        %v736 = vmul.f32 %v703, %v713
        %v737 = vmul.f32 %v704, %v713
        %v738 = vmul.f32 %v705, %v713
        %v739 = vmul.f32 %v706, %v713
        %v740 = vmul.f32 %v707, %v713
        %v741 = vmul.f32 %v708, %v713
        %v742 = vmul.f32 %v709, %v713
        %v743 = vmul.f32 %v710, %v713
        %v744 = vmul.f32 %v711, %v713
        %v745 = vmul.f32 %v712, %v713
        %v746 = vadd.f32 %v714, 0.0
        %v747 = vadd.f32 %v715, 0.0
        %v748 = vadd.f32 %v716, 0.0
        %v749 = vadd.f32 %v717, 0.0
        %v750 = vadd.f32 %v718, 0.0
        %v751 = vadd.f32 %v719, 0.0
        %v752 = vadd.f32 %v720, 0.0
        %v753 = vadd.f32 %v721, 0.0
        %v754 = vadd.f32 %v722, 0.0
        %v755 = vadd.f32 %v723, 0.0
        %v756 = vadd.f32 %v724, 0.0
        %v757 = vadd.f32 %v725, 0.0
        %v758 = vadd.f32 %v726, 0.0
        %v759 = vadd.f32 %v727, 0.0
        %v760 = vadd.f32 %v728, 0.0
        %v761 = vadd.f32 %v729, 0.0
        %v762 = vadd.f32 %v730, 0.0
        %v763 = vadd.f32 %v731, 0.0
        %v764 = vadd.f32 %v732, 0.0
        %v765 = vadd.f32 %v733, 0.0
        %v766 = vadd.f32 %v734, 0.0
        %v767 = vadd.f32 %v735, 0.0
        %v768 = vadd.f32 %v736, 0.0
        %v769 = vadd.f32 %v737, 0.0
        %v770 = vadd.f32 %v738, 0.0
        %v771 = vadd.f32 %v739, 0.0
        %v772 = vadd.f32 %v740, 0.0
        %v773 = vadd.f32 %v741, 0.0
        %v774 = vadd.f32 %v742, 0.0
        %v775 = vadd.f32 %v743, 0.0
        %v776 = vadd.f32 %v744, 0.0
        %v777 = vadd.f32 %v745, 0.0
        %v778 = vld [vmem:[#allocation2 + $0x1] sm:$0xff]
        %v779 = vld [vmem:[#allocation2 + $0x9] sm:$0xff]
        %v780 = vld [vmem:[#allocation2 + $0x19] sm:$0xff]
        %v781 = vld [vmem:[#allocation2 + $0x21] sm:$0xff]
        %v782 = vld [vmem:[#allocation2 + $0x31] sm:$0xff]
        %v783 = vld [vmem:[#allocation2 + $0x39] sm:$0xff]
        %v784 = vld [vmem:[#allocation2 + $0x49] sm:$0xff]
        %v785 = vld [vmem:[#allocation2 + $0x51] sm:$0xff]
        %v786 = vld [vmem:[#allocation2 + $0x61] sm:$0xff]
        %v787 = vld [vmem:[#allocation2 + $0x69] sm:$0xff]
        %v788 = vld [vmem:[#allocation2 + $0x79] sm:$0xff]
        %v789 = vld [vmem:[#allocation2 + $0x81] sm:$0xff]
        %v790 = vld [vmem:[#allocation2 + $0x91] sm:$0xff]
        %v791 = vld [vmem:[#allocation2 + $0x99] sm:$0xff]
        %v792 = vld [vmem:[#allocation2 + $0xa9] sm:$0xff]
        %v793 = vld [vmem:[#allocation2 + $0xb1] sm:$0xff]
        %v794 = vld [vmem:[#allocation2 + $0xc1] sm:$0xff]
        %v795 = vld [vmem:[#allocation2 + $0xc9] sm:$0xff]
        %v796 = vld [vmem:[#allocation2 + $0xd9] sm:$0xff]
        %v797 = vld [vmem:[#allocation2 + $0xe1] sm:$0xff]
        %v798 = vld [vmem:[#allocation2 + $0xf1] sm:$0xff]
        %v799 = vld [vmem:[#allocation2 + $0xf9] sm:$0xff]
        %v800 = vld [vmem:[#allocation2 + $0x109] sm:$0xff]
        %v801 = vld [vmem:[#allocation2 + $0x111] sm:$0xff]
        %v802 = vld [vmem:[#allocation2 + $0x121] sm:$0xff]
        %v803 = vld [vmem:[#allocation2 + $0x129] sm:$0xff]
        %v804 = vld [vmem:[#allocation2 + $0x139] sm:$0xff]
        %v805 = vld [vmem:[#allocation2 + $0x141] sm:$0xff]
        %v806 = vld [vmem:[#allocation2 + $0x151] sm:$0xff]
        %v807 = vld [vmem:[#allocation2 + $0x159] sm:$0xff]
        %v808 = vld [vmem:[#allocation2 + $0x169] sm:$0xff]
        %v809 = vld [vmem:[#allocation2 + $0x171] sm:$0xff]
        %v810 = vperm.slane %v678, 1
        %v811 = vmul.f32 %v778, %v810
        %v812 = vmul.f32 %v779, %v810
        %v813 = vmul.f32 %v780, %v810
        %v814 = vmul.f32 %v781, %v810
        %v815 = vmul.f32 %v782, %v810
        %v816 = vmul.f32 %v783, %v810
        %v817 = vmul.f32 %v784, %v810
        %v818 = vmul.f32 %v785, %v810
        %v819 = vmul.f32 %v786, %v810
        %v820 = vmul.f32 %v787, %v810
        %v821 = vmul.f32 %v788, %v810
        %v822 = vmul.f32 %v789, %v810
        %v823 = vmul.f32 %v790, %v810
        %v824 = vmul.f32 %v791, %v810
        %v825 = vmul.f32 %v792, %v810
        %v826 = vmul.f32 %v793, %v810
        %v827 = vmul.f32 %v794, %v810
        %v828 = vmul.f32 %v795, %v810
        %v829 = vmul.f32 %v796, %v810
        %v830 = vmul.f32 %v797, %v810
        %v831 = vmul.f32 %v798, %v810
        %v832 = vmul.f32 %v799, %v810
        %v833 = vmul.f32 %v800, %v810
        %v834 = vmul.f32 %v801, %v810
        %v835 = vmul.f32 %v802, %v810
        %v836 = vmul.f32 %v803, %v810
        %v837 = vmul.f32 %v804, %v810
        %v838 = vmul.f32 %v805, %v810
        %v839 = vmul.f32 %v806, %v810
        %v840 = vmul.f32 %v807, %v810
        %v841 = vmul.f32 %v808, %v810
        %v842 = vmul.f32 %v809, %v810
        %v843 = vadd.f32 %v746, %v811
        %v844 = vadd.f32 %v747, %v812
        %v845 = vadd.f32 %v748, %v813
        %v846 = vadd.f32 %v749, %v814
        %v847 = vadd.f32 %v750, %v815
        %v848 = vadd.f32 %v751, %v816
        %v849 = vadd.f32 %v752, %v817
        %v850 = vadd.f32 %v753, %v818
        %v851 = vadd.f32 %v754, %v819
        %v852 = vadd.f32 %v755, %v820
        %v853 = vadd.f32 %v756, %v821
        %v854 = vadd.f32 %v757, %v822
        %v855 = vadd.f32 %v758, %v823
        %v856 = vadd.f32 %v759, %v824
        %v857 = vadd.f32 %v760, %v825
        %v858 = vadd.f32 %v761, %v826
        %v859 = vadd.f32 %v762, %v827
        %v860 = vadd.f32 %v763, %v828
        %v861 = vadd.f32 %v764, %v829
        %v862 = vadd.f32 %v765, %v830
        %v863 = vadd.f32 %v766, %v831
        %v864 = vadd.f32 %v767, %v832
        %v865 = vadd.f32 %v768, %v833
        %v866 = vadd.f32 %v769, %v834
        %v867 = vadd.f32 %v770, %v835
        %v868 = vadd.f32 %v771, %v836
        %v869 = vadd.f32 %v772, %v837
        %v870 = vadd.f32 %v773, %v838
        %v871 = vadd.f32 %v774, %v839
        %v872 = vadd.f32 %v775, %v840
        %v873 = vadd.f32 %v776, %v841
        %v874 = vadd.f32 %v777, %v842
        %v875 = vld [vmem:[#allocation2 + $0x2] sm:$0xff]
        %v876 = vld [vmem:[#allocation2 + $0xa] sm:$0xff]
        %v877 = vld [vmem:[#allocation2 + $0x1a] sm:$0xff]
        %v878 = vld [vmem:[#allocation2 + $0x22] sm:$0xff]
        %v879 = vld [vmem:[#allocation2 + $0x32] sm:$0xff]
        %v880 = vld [vmem:[#allocation2 + $0x3a] sm:$0xff]
        %v881 = vld [vmem:[#allocation2 + $0x4a] sm:$0xff]
        %v882 = vld [vmem:[#allocation2 + $0x52] sm:$0xff]
        %v883 = vld [vmem:[#allocation2 + $0x62] sm:$0xff]
        %v884 = vld [vmem:[#allocation2 + $0x6a] sm:$0xff]
        %v885 = vld [vmem:[#allocation2 + $0x7a] sm:$0xff]
        %v886 = vld [vmem:[#allocation2 + $0x82] sm:$0xff]
        %v887 = vld [vmem:[#allocation2 + $0x92] sm:$0xff]
        %v888 = vld [vmem:[#allocation2 + $0x9a] sm:$0xff]
        %v889 = vld [vmem:[#allocation2 + $0xaa] sm:$0xff]
        %v890 = vld [vmem:[#allocation2 + $0xb2] sm:$0xff]
        %v891 = vld [vmem:[#allocation2 + $0xc2] sm:$0xff]
        %v892 = vld [vmem:[#allocation2 + $0xca] sm:$0xff]
        %v893 = vld [vmem:[#allocation2 + $0xda] sm:$0xff]
        %v894 = vld [vmem:[#allocation2 + $0xe2] sm:$0xff]
        %v895 = vld [vmem:[#allocation2 + $0xf2] sm:$0xff]
        %v896 = vld [vmem:[#allocation2 + $0xfa] sm:$0xff]
        %v897 = vld [vmem:[#allocation2 + $0x10a] sm:$0xff]
        %v898 = vld [vmem:[#allocation2 + $0x112] sm:$0xff]
        %v899 = vld [vmem:[#allocation2 + $0x122] sm:$0xff]
        %v900 = vld [vmem:[#allocation2 + $0x12a] sm:$0xff]
        %v901 = vld [vmem:[#allocation2 + $0x13a] sm:$0xff]
        %v902 = vld [vmem:[#allocation2 + $0x142] sm:$0xff]
        %v903 = vld [vmem:[#allocation2 + $0x152] sm:$0xff]
        %v904 = vld [vmem:[#allocation2 + $0x15a] sm:$0xff]
        %v905 = vld [vmem:[#allocation2 + $0x16a] sm:$0xff]
        %v906 = vld [vmem:[#allocation2 + $0x172] sm:$0xff]
        %v907 = vperm.slane %v678, 2
        %v908 = vmul.f32 %v875, %v907
        %v909 = vmul.f32 %v876, %v907
        %v910 = vmul.f32 %v877, %v907
        %v911 = vmul.f32 %v878, %v907
        %v912 = vmul.f32 %v879, %v907
        %v913 = vmul.f32 %v880, %v907
        %v914 = vmul.f32 %v881, %v907
        %v915 = vmul.f32 %v882, %v907
        %v916 = vmul.f32 %v883, %v907
        %v917 = vmul.f32 %v884, %v907
        %v918 = vmul.f32 %v885, %v907
        %v919 = vmul.f32 %v886, %v907
        %v920 = vmul.f32 %v887, %v907
        %v921 = vmul.f32 %v888, %v907
        %v922 = vmul.f32 %v889, %v907
        %v923 = vmul.f32 %v890, %v907
        %v924 = vmul.f32 %v891, %v907
        %v925 = vmul.f32 %v892, %v907
        %v926 = vmul.f32 %v893, %v907
        %v927 = vmul.f32 %v894, %v907
        %v928 = vmul.f32 %v895, %v907
        %v929 = vmul.f32 %v896, %v907
        %v930 = vmul.f32 %v897, %v907
        %v931 = vmul.f32 %v898, %v907
        %v932 = vmul.f32 %v899, %v907
        %v933 = vmul.f32 %v900, %v907
        %v934 = vmul.f32 %v901, %v907
        %v935 = vmul.f32 %v902, %v907
        %v936 = vmul.f32 %v903, %v907
        %v937 = vmul.f32 %v904, %v907
        %v938 = vmul.f32 %v905, %v907
        %v939 = vmul.f32 %v906, %v907
        %v940 = vadd.f32 %v843, %v908
        %v941 = vadd.f32 %v844, %v909
        %v942 = vadd.f32 %v845, %v910
        %v943 = vadd.f32 %v846, %v911
        %v944 = vadd.f32 %v847, %v912
        %v945 = vadd.f32 %v848, %v913
        %v946 = vadd.f32 %v849, %v914
        %v947 = vadd.f32 %v850, %v915
        %v948 = vadd.f32 %v851, %v916
        %v949 = vadd.f32 %v852, %v917
        %v950 = vadd.f32 %v853, %v918
        %v951 = vadd.f32 %v854, %v919
        %v952 = vadd.f32 %v855, %v920
        %v953 = vadd.f32 %v856, %v921
        %v954 = vadd.f32 %v857, %v922
        %v955 = vadd.f32 %v858, %v923
        %v956 = vadd.f32 %v859, %v924
        %v957 = vadd.f32 %v860, %v925
        %v958 = vadd.f32 %v861, %v926
        %v959 = vadd.f32 %v862, %v927
        %v960 = vadd.f32 %v863, %v928
        %v961 = vadd.f32 %v864, %v929
        %v962 = vadd.f32 %v865, %v930
        %v963 = vadd.f32 %v866, %v931
        %v964 = vadd.f32 %v867, %v932
        %v965 = vadd.f32 %v868, %v933
        %v966 = vadd.f32 %v869, %v934
        %v967 = vadd.f32 %v870, %v935
        %v968 = vadd.f32 %v871, %v936
        %v969 = vadd.f32 %v872, %v937
        %v970 = vadd.f32 %v873, %v938
        %v971 = vadd.f32 %v874, %v939
        %v972 = vld [vmem:[%s610] sm:$0xff]
        %v973 = vld [vmem:[%s610 + $0x8] sm:$0xff]
        %v974 = vld [vmem:[%s610 + $0x18] sm:$0xff]
        %v975 = vld [vmem:[%s610 + $0x20] sm:$0xff]
        %v976 = vld [vmem:[%s610 + $0x30] sm:$0xff]
        %v977 = vld [vmem:[%s610 + $0x38] sm:$0xff]
        %v978 = vld [vmem:[%s610 + $0x48] sm:$0xff]
        %v979 = vld [vmem:[%s610 + $0x50] sm:$0xff]
        %v980 = vld [vmem:[%s610 + $0x60] sm:$0xff]
        %v981 = vld [vmem:[%s610 + $0x68] sm:$0xff]
        %v982 = vld [vmem:[%s610 + $0x78] sm:$0xff]
        %v983 = vld [vmem:[%s610 + $0x80] sm:$0xff]
        %v984 = vld [vmem:[%s610 + $0x90] sm:$0xff]
        %v985 = vld [vmem:[%s610 + $0x98] sm:$0xff]
        %v986 = vld [vmem:[%s610 + $0xa8] sm:$0xff]
        %v987 = vld [vmem:[%s610 + $0xb0] sm:$0xff]
        %v988 = vld [vmem:[%s610 + $0xc0] sm:$0xff]
        %v989 = vld [vmem:[%s610 + $0xc8] sm:$0xff]
        %v990 = vld [vmem:[%s610 + $0xd8] sm:$0xff]
        %v991 = vld [vmem:[%s610 + $0xe0] sm:$0xff]
        %v992 = vld [vmem:[%s610 + $0xf0] sm:$0xff]
        %v993 = vld [vmem:[%s610 + $0xf8] sm:$0xff]
        %v994 = vld [vmem:[%s610 + $0x108] sm:$0xff]
        %v995 = vld [vmem:[%s610 + $0x110] sm:$0xff]
        %v996 = vld [vmem:[%s610 + $0x120] sm:$0xff]
        %v997 = vld [vmem:[%s610 + $0x128] sm:$0xff]
        %v998 = vld [vmem:[%s610 + $0x138] sm:$0xff]
        %v999 = vld [vmem:[%s610 + $0x140] sm:$0xff]
        %v1000 = vld [vmem:[%s610 + $0x150] sm:$0xff]
        %v1001 = vld [vmem:[%s610 + $0x158] sm:$0xff]
        %v1002 = vld [vmem:[%s610 + $0x168] sm:$0xff]
        %v1003 = vld [vmem:[%s610 + $0x170] sm:$0xff]
        %v1004 = vperm.slane %v678, 3
        %v1005 = vmul.f32 %v972, %v1004
        %v1006 = vmul.f32 %v973, %v1004
        %v1007 = vmul.f32 %v974, %v1004
        %v1008 = vmul.f32 %v975, %v1004
        %v1009 = vmul.f32 %v976, %v1004
        %v1010 = vmul.f32 %v977, %v1004
        %v1011 = vmul.f32 %v978, %v1004
        %v1012 = vmul.f32 %v979, %v1004
        %v1013 = vmul.f32 %v980, %v1004
        %v1014 = vmul.f32 %v981, %v1004
        %v1015 = vmul.f32 %v982, %v1004
        %v1016 = vmul.f32 %v983, %v1004
        %v1017 = vmul.f32 %v984, %v1004
        %v1018 = vmul.f32 %v985, %v1004
        %v1019 = vmul.f32 %v986, %v1004
        %v1020 = vmul.f32 %v987, %v1004
        %v1021 = vmul.f32 %v988, %v1004
        %v1022 = vmul.f32 %v989, %v1004
        %v1023 = vmul.f32 %v990, %v1004
        %v1024 = vmul.f32 %v991, %v1004
        %v1025 = vmul.f32 %v992, %v1004
        %v1026 = vmul.f32 %v993, %v1004
        %v1027 = vmul.f32 %v994, %v1004
        %v1028 = vmul.f32 %v995, %v1004
        %v1029 = vmul.f32 %v996, %v1004
        %v1030 = vmul.f32 %v997, %v1004
        %v1031 = vmul.f32 %v998, %v1004
        %v1032 = vmul.f32 %v999, %v1004
        %v1033 = vmul.f32 %v1000, %v1004
        %v1034 = vmul.f32 %v1001, %v1004
        %v1035 = vmul.f32 %v1002, %v1004
        %v1036 = vmul.f32 %v1003, %v1004
        %v1037 = vadd.f32 %v940, %v1005
        %v1038 = vadd.f32 %v941, %v1006
        %v1039 = vadd.f32 %v942, %v1007
        %v1040 = vadd.f32 %v943, %v1008
        %v1041 = vadd.f32 %v944, %v1009
        %v1042 = vadd.f32 %v945, %v1010
        %v1043 = vadd.f32 %v946, %v1011
        %v1044 = vadd.f32 %v947, %v1012
        %v1045 = vadd.f32 %v948, %v1013
        %v1046 = vadd.f32 %v949, %v1014
        %v1047 = vadd.f32 %v950, %v1015
        %v1048 = vadd.f32 %v951, %v1016
        %v1049 = vadd.f32 %v952, %v1017
        %v1050 = vadd.f32 %v953, %v1018
        %v1051 = vadd.f32 %v954, %v1019
        %v1052 = vadd.f32 %v955, %v1020
        %v1053 = vadd.f32 %v956, %v1021
        %v1054 = vadd.f32 %v957, %v1022
        %v1055 = vadd.f32 %v958, %v1023
        %v1056 = vadd.f32 %v959, %v1024
        %v1057 = vadd.f32 %v960, %v1025
        %v1058 = vadd.f32 %v961, %v1026
        %v1059 = vadd.f32 %v962, %v1027
        %v1060 = vadd.f32 %v963, %v1028
        %v1061 = vadd.f32 %v964, %v1029
        %v1062 = vadd.f32 %v965, %v1030
        %v1063 = vadd.f32 %v966, %v1031
        %v1064 = vadd.f32 %v967, %v1032
        %v1065 = vadd.f32 %v968, %v1033
        %v1066 = vadd.f32 %v969, %v1034
        %v1067 = vadd.f32 %v970, %v1035
        %v1068 = vadd.f32 %v971, %v1036
        %v1069 = vld [vmem:[%s610 + $0x1] sm:$0xff]
        %v1070 = vld [vmem:[%s610 + $0x9] sm:$0xff]
        %v1071 = vld [vmem:[%s610 + $0x19] sm:$0xff]
        %v1072 = vld [vmem:[%s610 + $0x21] sm:$0xff]
        %v1073 = vld [vmem:[%s610 + $0x31] sm:$0xff]
        %v1074 = vld [vmem:[%s610 + $0x39] sm:$0xff]
        %v1075 = vld [vmem:[%s610 + $0x49] sm:$0xff]
        %v1076 = vld [vmem:[%s610 + $0x51] sm:$0xff]
        %v1077 = vld [vmem:[%s610 + $0x61] sm:$0xff]
        %v1078 = vld [vmem:[%s610 + $0x69] sm:$0xff]
        %v1079 = vld [vmem:[%s610 + $0x79] sm:$0xff]
        %v1080 = vld [vmem:[%s610 + $0x81] sm:$0xff]
        %v1081 = vld [vmem:[%s610 + $0x91] sm:$0xff]
        %v1082 = vld [vmem:[%s610 + $0x99] sm:$0xff]
        %v1083 = vld [vmem:[%s610 + $0xa9] sm:$0xff]
        %v1084 = vld [vmem:[%s610 + $0xb1] sm:$0xff]
        %v1085 = vld [vmem:[%s610 + $0xc1] sm:$0xff]
        %v1086 = vld [vmem:[%s610 + $0xc9] sm:$0xff]
        %v1087 = vld [vmem:[%s610 + $0xd9] sm:$0xff]
        %v1088 = vld [vmem:[%s610 + $0xe1] sm:$0xff]
        %v1089 = vld [vmem:[%s610 + $0xf1] sm:$0xff]
        %v1090 = vld [vmem:[%s610 + $0xf9] sm:$0xff]
        %v1091 = vld [vmem:[%s610 + $0x109] sm:$0xff]
        %v1092 = vld [vmem:[%s610 + $0x111] sm:$0xff]
        %v1093 = vld [vmem:[%s610 + $0x121] sm:$0xff]
        %v1094 = vld [vmem:[%s610 + $0x129] sm:$0xff]
        %v1095 = vld [vmem:[%s610 + $0x139] sm:$0xff]
        %v1096 = vld [vmem:[%s610 + $0x141] sm:$0xff]
        %v1097 = vld [vmem:[%s610 + $0x151] sm:$0xff]
        %v1098 = vld [vmem:[%s610 + $0x159] sm:$0xff]
        %v1099 = vld [vmem:[%s610 + $0x169] sm:$0xff]
        %v1100 = vld [vmem:[%s610 + $0x171] sm:$0xff]
        %v1101 = vperm.slane %v678, 4
        %v1102 = vmul.f32 %v1069, %v1101
        %v1103 = vmul.f32 %v1070, %v1101
        %v1104 = vmul.f32 %v1071, %v1101
        %v1105 = vmul.f32 %v1072, %v1101
        %v1106 = vmul.f32 %v1073, %v1101
        %v1107 = vmul.f32 %v1074, %v1101
        %v1108 = vmul.f32 %v1075, %v1101
        %v1109 = vmul.f32 %v1076, %v1101
        %v1110 = vmul.f32 %v1077, %v1101
        %v1111 = vmul.f32 %v1078, %v1101
        %v1112 = vmul.f32 %v1079, %v1101
        %v1113 = vmul.f32 %v1080, %v1101
        %v1114 = vmul.f32 %v1081, %v1101
        %v1115 = vmul.f32 %v1082, %v1101
        %v1116 = vmul.f32 %v1083, %v1101
        %v1117 = vmul.f32 %v1084, %v1101
        %v1118 = vmul.f32 %v1085, %v1101
        %v1119 = vmul.f32 %v1086, %v1101
        %v1120 = vmul.f32 %v1087, %v1101
        %v1121 = vmul.f32 %v1088, %v1101
        %v1122 = vmul.f32 %v1089, %v1101
        %v1123 = vmul.f32 %v1090, %v1101
        %v1124 = vmul.f32 %v1091, %v1101
        %v1125 = vmul.f32 %v1092, %v1101
        %v1126 = vmul.f32 %v1093, %v1101
        %v1127 = vmul.f32 %v1094, %v1101
        %v1128 = vmul.f32 %v1095, %v1101
        %v1129 = vmul.f32 %v1096, %v1101
        %v1130 = vmul.f32 %v1097, %v1101
        %v1131 = vmul.f32 %v1098, %v1101
        %v1132 = vmul.f32 %v1099, %v1101
        %v1133 = vmul.f32 %v1100, %v1101
        %v1134 = vadd.f32 %v1037, %v1102
        %v1135 = vadd.f32 %v1038, %v1103
        %v1136 = vadd.f32 %v1039, %v1104
        %v1137 = vadd.f32 %v1040, %v1105
        %v1138 = vadd.f32 %v1041, %v1106
        %v1139 = vadd.f32 %v1042, %v1107
        %v1140 = vadd.f32 %v1043, %v1108
        %v1141 = vadd.f32 %v1044, %v1109
        %v1142 = vadd.f32 %v1045, %v1110
        %v1143 = vadd.f32 %v1046, %v1111
        %v1144 = vadd.f32 %v1047, %v1112
        %v1145 = vadd.f32 %v1048, %v1113
        %v1146 = vadd.f32 %v1049, %v1114
        %v1147 = vadd.f32 %v1050, %v1115
        %v1148 = vadd.f32 %v1051, %v1116
        %v1149 = vadd.f32 %v1052, %v1117
        %v1150 = vadd.f32 %v1053, %v1118
        %v1151 = vadd.f32 %v1054, %v1119
        %v1152 = vadd.f32 %v1055, %v1120
        %v1153 = vadd.f32 %v1056, %v1121
        %v1154 = vadd.f32 %v1057, %v1122
        %v1155 = vadd.f32 %v1058, %v1123
        %v1156 = vadd.f32 %v1059, %v1124
        %v1157 = vadd.f32 %v1060, %v1125
        %v1158 = vadd.f32 %v1061, %v1126
        %v1159 = vadd.f32 %v1062, %v1127
        %v1160 = vadd.f32 %v1063, %v1128
        %v1161 = vadd.f32 %v1064, %v1129
        %v1162 = vadd.f32 %v1065, %v1130
        %v1163 = vadd.f32 %v1066, %v1131
        %v1164 = vadd.f32 %v1067, %v1132
        %v1165 = vadd.f32 %v1068, %v1133
        %v1166 = vld [vmem:[%s610 + $0x2] sm:$0xff]
        %v1167 = vld [vmem:[%s610 + $0xa] sm:$0xff]
        %v1168 = vld [vmem:[%s610 + $0x1a] sm:$0xff]
        %v1169 = vld [vmem:[%s610 + $0x22] sm:$0xff]
        %v1170 = vld [vmem:[%s610 + $0x32] sm:$0xff]
        %v1171 = vld [vmem:[%s610 + $0x3a] sm:$0xff]
        %v1172 = vld [vmem:[%s610 + $0x4a] sm:$0xff]
        %v1173 = vld [vmem:[%s610 + $0x52] sm:$0xff]
        %v1174 = vld [vmem:[%s610 + $0x62] sm:$0xff]
        %v1175 = vld [vmem:[%s610 + $0x6a] sm:$0xff]
        %v1176 = vld [vmem:[%s610 + $0x7a] sm:$0xff]
        %v1177 = vld [vmem:[%s610 + $0x82] sm:$0xff]
        %v1178 = vld [vmem:[%s610 + $0x92] sm:$0xff]
        %v1179 = vld [vmem:[%s610 + $0x9a] sm:$0xff]
        %v1180 = vld [vmem:[%s610 + $0xaa] sm:$0xff]
        %v1181 = vld [vmem:[%s610 + $0xb2] sm:$0xff]
        %v1182 = vld [vmem:[%s610 + $0xc2] sm:$0xff]
        %v1183 = vld [vmem:[%s610 + $0xca] sm:$0xff]
        %v1184 = vld [vmem:[%s610 + $0xda] sm:$0xff]
        %v1185 = vld [vmem:[%s610 + $0xe2] sm:$0xff]
        %v1186 = vld [vmem:[%s610 + $0xf2] sm:$0xff]
        %v1187 = vld [vmem:[%s610 + $0xfa] sm:$0xff]
        %v1188 = vld [vmem:[%s610 + $0x10a] sm:$0xff]
        %v1189 = vld [vmem:[%s610 + $0x112] sm:$0xff]
        %v1190 = vld [vmem:[%s610 + $0x122] sm:$0xff]
        %v1191 = vld [vmem:[%s610 + $0x12a] sm:$0xff]
        %v1192 = vld [vmem:[%s610 + $0x13a] sm:$0xff]
        %v1193 = vld [vmem:[%s610 + $0x142] sm:$0xff]
        %v1194 = vld [vmem:[%s610 + $0x152] sm:$0xff]
        %v1195 = vld [vmem:[%s610 + $0x15a] sm:$0xff]
        %v1196 = vld [vmem:[%s610 + $0x16a] sm:$0xff]
        %v1197 = vld [vmem:[%s610 + $0x172] sm:$0xff]
        %v1198 = vperm.slane %v678, 5
        %v1199 = vmul.f32 %v1166, %v1198
        %v1200 = vmul.f32 %v1167, %v1198
        %v1201 = vmul.f32 %v1168, %v1198
        %v1202 = vmul.f32 %v1169, %v1198
        %v1203 = vmul.f32 %v1170, %v1198
        %v1204 = vmul.f32 %v1171, %v1198
        %v1205 = vmul.f32 %v1172, %v1198
        %v1206 = vmul.f32 %v1173, %v1198
        %v1207 = vmul.f32 %v1174, %v1198
        %v1208 = vmul.f32 %v1175, %v1198
        %v1209 = vmul.f32 %v1176, %v1198
        %v1210 = vmul.f32 %v1177, %v1198
        %v1211 = vmul.f32 %v1178, %v1198
        %v1212 = vmul.f32 %v1179, %v1198
        %v1213 = vmul.f32 %v1180, %v1198
        %v1214 = vmul.f32 %v1181, %v1198
        %v1215 = vmul.f32 %v1182, %v1198
        %v1216 = vmul.f32 %v1183, %v1198
        %v1217 = vmul.f32 %v1184, %v1198
        %v1218 = vmul.f32 %v1185, %v1198
        %v1219 = vmul.f32 %v1186, %v1198
        %v1220 = vmul.f32 %v1187, %v1198
        %v1221 = vmul.f32 %v1188, %v1198
        %v1222 = vmul.f32 %v1189, %v1198
        %v1223 = vmul.f32 %v1190, %v1198
        %v1224 = vmul.f32 %v1191, %v1198
        %v1225 = vmul.f32 %v1192, %v1198
        %v1226 = vmul.f32 %v1193, %v1198
        %v1227 = vmul.f32 %v1194, %v1198
        %v1228 = vmul.f32 %v1195, %v1198
        %v1229 = vmul.f32 %v1196, %v1198
        %v1230 = vmul.f32 %v1197, %v1198
        %v1231 = vadd.f32 %v1134, %v1199
        %v1232 = vadd.f32 %v1135, %v1200
        %v1233 = vadd.f32 %v1136, %v1201
        %v1234 = vadd.f32 %v1137, %v1202
        %v1235 = vadd.f32 %v1138, %v1203
        %v1236 = vadd.f32 %v1139, %v1204
        %v1237 = vadd.f32 %v1140, %v1205
        %v1238 = vadd.f32 %v1141, %v1206
        %v1239 = vadd.f32 %v1142, %v1207
        %v1240 = vadd.f32 %v1143, %v1208
        %v1241 = vadd.f32 %v1144, %v1209
        %v1242 = vadd.f32 %v1145, %v1210
        %v1243 = vadd.f32 %v1146, %v1211
        %v1244 = vadd.f32 %v1147, %v1212
        %v1245 = vadd.f32 %v1148, %v1213
        %v1246 = vadd.f32 %v1149, %v1214
        %v1247 = vadd.f32 %v1150, %v1215
        %v1248 = vadd.f32 %v1151, %v1216
        %v1249 = vadd.f32 %v1152, %v1217
        %v1250 = vadd.f32 %v1153, %v1218
        %v1251 = vadd.f32 %v1154, %v1219
        %v1252 = vadd.f32 %v1155, %v1220
        %v1253 = vadd.f32 %v1156, %v1221
        %v1254 = vadd.f32 %v1157, %v1222
        %v1255 = vadd.f32 %v1158, %v1223
        %v1256 = vadd.f32 %v1159, %v1224
        %v1257 = vadd.f32 %v1160, %v1225
        %v1258 = vadd.f32 %v1161, %v1226
        %v1259 = vadd.f32 %v1162, %v1227
        %v1260 = vadd.f32 %v1163, %v1228
        %v1261 = vadd.f32 %v1164, %v1229
        %v1262 = vadd.f32 %v1165, %v1230
        %s1263 = scalar_lea.vmem [#allocation2], 48
        %v1264 = vld [vmem:[%s1263] sm:$0xff]
        %v1265 = vld [vmem:[%s1263 + $0x8] sm:$0xff]
        %v1266 = vld [vmem:[%s1263 + $0x18] sm:$0xff]
        %v1267 = vld [vmem:[%s1263 + $0x20] sm:$0xff]
        %v1268 = vld [vmem:[%s1263 + $0x30] sm:$0xff]
        %v1269 = vld [vmem:[%s1263 + $0x38] sm:$0xff]
        %v1270 = vld [vmem:[%s1263 + $0x48] sm:$0xff]
        %v1271 = vld [vmem:[%s1263 + $0x50] sm:$0xff]
        %v1272 = vld [vmem:[%s1263 + $0x60] sm:$0xff]
        %v1273 = vld [vmem:[%s1263 + $0x68] sm:$0xff]
        %v1274 = vld [vmem:[%s1263 + $0x78] sm:$0xff]
        %v1275 = vld [vmem:[%s1263 + $0x80] sm:$0xff]
        %v1276 = vld [vmem:[%s1263 + $0x90] sm:$0xff]
        %v1277 = vld [vmem:[%s1263 + $0x98] sm:$0xff]
        %v1278 = vld [vmem:[%s1263 + $0xa8] sm:$0xff]
        %v1279 = vld [vmem:[%s1263 + $0xb0] sm:$0xff]
        %v1280 = vld [vmem:[%s1263 + $0xc0] sm:$0xff]
        %v1281 = vld [vmem:[%s1263 + $0xc8] sm:$0xff]
        %v1282 = vld [vmem:[%s1263 + $0xd8] sm:$0xff]
        %v1283 = vld [vmem:[%s1263 + $0xe0] sm:$0xff]
        %v1284 = vld [vmem:[%s1263 + $0xf0] sm:$0xff]
        %v1285 = vld [vmem:[%s1263 + $0xf8] sm:$0xff]
        %v1286 = vld [vmem:[%s1263 + $0x108] sm:$0xff]
        %v1287 = vld [vmem:[%s1263 + $0x110] sm:$0xff]
        %v1288 = vld [vmem:[%s1263 + $0x120] sm:$0xff]
        %v1289 = vld [vmem:[%s1263 + $0x128] sm:$0xff]
        %v1290 = vld [vmem:[%s1263 + $0x138] sm:$0xff]
        %v1291 = vld [vmem:[%s1263 + $0x140] sm:$0xff]
        %v1292 = vld [vmem:[%s1263 + $0x150] sm:$0xff]
        %v1293 = vld [vmem:[%s1263 + $0x158] sm:$0xff]
        %v1294 = vld [vmem:[%s1263 + $0x168] sm:$0xff]
        %v1295 = vld [vmem:[%s1263 + $0x170] sm:$0xff]
        %v1296 = vperm.slane %v678, 6
        %v1297 = vmul.f32 %v1264, %v1296
        %v1298 = vmul.f32 %v1265, %v1296
        %v1299 = vmul.f32 %v1266, %v1296
        %v1300 = vmul.f32 %v1267, %v1296
        %v1301 = vmul.f32 %v1268, %v1296
        %v1302 = vmul.f32 %v1269, %v1296
        %v1303 = vmul.f32 %v1270, %v1296
        %v1304 = vmul.f32 %v1271, %v1296
        %v1305 = vmul.f32 %v1272, %v1296
        %v1306 = vmul.f32 %v1273, %v1296
        %v1307 = vmul.f32 %v1274, %v1296
        %v1308 = vmul.f32 %v1275, %v1296
        %v1309 = vmul.f32 %v1276, %v1296
        %v1310 = vmul.f32 %v1277, %v1296
        %v1311 = vmul.f32 %v1278, %v1296
        %v1312 = vmul.f32 %v1279, %v1296
        %v1313 = vmul.f32 %v1280, %v1296
        %v1314 = vmul.f32 %v1281, %v1296
        %v1315 = vmul.f32 %v1282, %v1296
        %v1316 = vmul.f32 %v1283, %v1296
        %v1317 = vmul.f32 %v1284, %v1296
        %v1318 = vmul.f32 %v1285, %v1296
        %v1319 = vmul.f32 %v1286, %v1296
        %v1320 = vmul.f32 %v1287, %v1296
        %v1321 = vmul.f32 %v1288, %v1296
        %v1322 = vmul.f32 %v1289, %v1296
        %v1323 = vmul.f32 %v1290, %v1296
        %v1324 = vmul.f32 %v1291, %v1296
        %v1325 = vmul.f32 %v1292, %v1296
        %v1326 = vmul.f32 %v1293, %v1296
        %v1327 = vmul.f32 %v1294, %v1296
        %v1328 = vmul.f32 %v1295, %v1296
        %v1329 = vadd.f32 %v1231, %v1297
        %v1330 = vadd.f32 %v1232, %v1298
        %v1331 = vadd.f32 %v1233, %v1299
        %v1332 = vadd.f32 %v1234, %v1300
        %v1333 = vadd.f32 %v1235, %v1301
        %v1334 = vadd.f32 %v1236, %v1302
        %v1335 = vadd.f32 %v1237, %v1303
        %v1336 = vadd.f32 %v1238, %v1304
        %v1337 = vadd.f32 %v1239, %v1305
        %v1338 = vadd.f32 %v1240, %v1306
        %v1339 = vadd.f32 %v1241, %v1307
        %v1340 = vadd.f32 %v1242, %v1308
        %v1341 = vadd.f32 %v1243, %v1309
        %v1342 = vadd.f32 %v1244, %v1310
        %v1343 = vadd.f32 %v1245, %v1311
        %v1344 = vadd.f32 %v1246, %v1312
        %v1345 = vadd.f32 %v1247, %v1313
        %v1346 = vadd.f32 %v1248, %v1314
        %v1347 = vadd.f32 %v1249, %v1315
        %v1348 = vadd.f32 %v1250, %v1316
        %v1349 = vadd.f32 %v1251, %v1317
        %v1350 = vadd.f32 %v1252, %v1318
        %v1351 = vadd.f32 %v1253, %v1319
        %v1352 = vadd.f32 %v1254, %v1320
        %v1353 = vadd.f32 %v1255, %v1321
        %v1354 = vadd.f32 %v1256, %v1322
        %v1355 = vadd.f32 %v1257, %v1323
        %v1356 = vadd.f32 %v1258, %v1324
        %v1357 = vadd.f32 %v1259, %v1325
        %v1358 = vadd.f32 %v1260, %v1326
        %v1359 = vadd.f32 %v1261, %v1327
        %v1360 = vadd.f32 %v1262, %v1328
        %v1361 = vld [vmem:[%s1263 + $0x1] sm:$0xff]
        %v1362 = vld [vmem:[%s1263 + $0x9] sm:$0xff]
        %v1363 = vld [vmem:[%s1263 + $0x19] sm:$0xff]
        %v1364 = vld [vmem:[%s1263 + $0x21] sm:$0xff]
        %v1365 = vld [vmem:[%s1263 + $0x31] sm:$0xff]
        %v1366 = vld [vmem:[%s1263 + $0x39] sm:$0xff]
        %v1367 = vld [vmem:[%s1263 + $0x49] sm:$0xff]
        %v1368 = vld [vmem:[%s1263 + $0x51] sm:$0xff]
        %v1369 = vld [vmem:[%s1263 + $0x61] sm:$0xff]
        %v1370 = vld [vmem:[%s1263 + $0x69] sm:$0xff]
        %v1371 = vld [vmem:[%s1263 + $0x79] sm:$0xff]
        %v1372 = vld [vmem:[%s1263 + $0x81] sm:$0xff]
        %v1373 = vld [vmem:[%s1263 + $0x91] sm:$0xff]
        %v1374 = vld [vmem:[%s1263 + $0x99] sm:$0xff]
        %v1375 = vld [vmem:[%s1263 + $0xa9] sm:$0xff]
        %v1376 = vld [vmem:[%s1263 + $0xb1] sm:$0xff]
        %v1377 = vld [vmem:[%s1263 + $0xc1] sm:$0xff]
        %v1378 = vld [vmem:[%s1263 + $0xc9] sm:$0xff]
        %v1379 = vld [vmem:[%s1263 + $0xd9] sm:$0xff]
        %v1380 = vld [vmem:[%s1263 + $0xe1] sm:$0xff]
        %v1381 = vld [vmem:[%s1263 + $0xf1] sm:$0xff]
        %v1382 = vld [vmem:[%s1263 + $0xf9] sm:$0xff]
        %v1383 = vld [vmem:[%s1263 + $0x109] sm:$0xff]
        %v1384 = vld [vmem:[%s1263 + $0x111] sm:$0xff]
        %v1385 = vld [vmem:[%s1263 + $0x121] sm:$0xff]
        %v1386 = vld [vmem:[%s1263 + $0x129] sm:$0xff]
        %v1387 = vld [vmem:[%s1263 + $0x139] sm:$0xff]
        %v1388 = vld [vmem:[%s1263 + $0x141] sm:$0xff]
        %v1389 = vld [vmem:[%s1263 + $0x151] sm:$0xff]
        %v1390 = vld [vmem:[%s1263 + $0x159] sm:$0xff]
        %v1391 = vld [vmem:[%s1263 + $0x169] sm:$0xff]
        %v1392 = vld [vmem:[%s1263 + $0x171] sm:$0xff]
        %v1393 = vperm.slane %v678, 7
        %v1394 = vmul.f32 %v1361, %v1393
        %v1395 = vmul.f32 %v1362, %v1393
        %v1396 = vmul.f32 %v1363, %v1393
        %v1397 = vmul.f32 %v1364, %v1393
        %v1398 = vmul.f32 %v1365, %v1393
        %v1399 = vmul.f32 %v1366, %v1393
        %v1400 = vmul.f32 %v1367, %v1393
        %v1401 = vmul.f32 %v1368, %v1393
        %v1402 = vmul.f32 %v1369, %v1393
        %v1403 = vmul.f32 %v1370, %v1393
        %v1404 = vmul.f32 %v1371, %v1393
        %v1405 = vmul.f32 %v1372, %v1393
        %v1406 = vmul.f32 %v1373, %v1393
        %v1407 = vmul.f32 %v1374, %v1393
        %v1408 = vmul.f32 %v1375, %v1393
        %v1409 = vmul.f32 %v1376, %v1393
        %v1410 = vmul.f32 %v1377, %v1393
        %v1411 = vmul.f32 %v1378, %v1393
        %v1412 = vmul.f32 %v1379, %v1393
        %v1413 = vmul.f32 %v1380, %v1393
        %v1414 = vmul.f32 %v1381, %v1393
        %v1415 = vmul.f32 %v1382, %v1393
        %v1416 = vmul.f32 %v1383, %v1393
        %v1417 = vmul.f32 %v1384, %v1393
        %v1418 = vmul.f32 %v1385, %v1393
        %v1419 = vmul.f32 %v1386, %v1393
        %v1420 = vmul.f32 %v1387, %v1393
        %v1421 = vmul.f32 %v1388, %v1393
        %v1422 = vmul.f32 %v1389, %v1393
        %v1423 = vmul.f32 %v1390, %v1393
        %v1424 = vmul.f32 %v1391, %v1393
        %v1425 = vmul.f32 %v1392, %v1393
        %v1426 = vadd.f32 %v1329, %v1394
        %v1427 = vadd.f32 %v1330, %v1395
        %v1428 = vadd.f32 %v1331, %v1396
        %v1429 = vadd.f32 %v1332, %v1397
        %v1430 = vadd.f32 %v1333, %v1398
        %v1431 = vadd.f32 %v1334, %v1399
        %v1432 = vadd.f32 %v1335, %v1400
        %v1433 = vadd.f32 %v1336, %v1401
        %v1434 = vadd.f32 %v1337, %v1402
        %v1435 = vadd.f32 %v1338, %v1403
        %v1436 = vadd.f32 %v1339, %v1404
        %v1437 = vadd.f32 %v1340, %v1405
        %v1438 = vadd.f32 %v1341, %v1406
        %v1439 = vadd.f32 %v1342, %v1407
        %v1440 = vadd.f32 %v1343, %v1408
        %v1441 = vadd.f32 %v1344, %v1409
        %v1442 = vadd.f32 %v1345, %v1410
        %v1443 = vadd.f32 %v1346, %v1411
        %v1444 = vadd.f32 %v1347, %v1412
        %v1445 = vadd.f32 %v1348, %v1413
        %v1446 = vadd.f32 %v1349, %v1414
        %v1447 = vadd.f32 %v1350, %v1415
        %v1448 = vadd.f32 %v1351, %v1416
        %v1449 = vadd.f32 %v1352, %v1417
        %v1450 = vadd.f32 %v1353, %v1418
        %v1451 = vadd.f32 %v1354, %v1419
        %v1452 = vadd.f32 %v1355, %v1420
        %v1453 = vadd.f32 %v1356, %v1421
        %v1454 = vadd.f32 %v1357, %v1422
        %v1455 = vadd.f32 %v1358, %v1423
        %v1456 = vadd.f32 %v1359, %v1424
        %v1457 = vadd.f32 %v1360, %v1425
        %v1458 = vld [vmem:[%s1263 + $0x2] sm:$0xff]
        %v1459 = vld [vmem:[%s1263 + $0xa] sm:$0xff]
        %v1460 = vld [vmem:[%s1263 + $0x1a] sm:$0xff]
        %v1461 = vld [vmem:[%s1263 + $0x22] sm:$0xff]
        %v1462 = vld [vmem:[%s1263 + $0x32] sm:$0xff]
        %v1463 = vld [vmem:[%s1263 + $0x3a] sm:$0xff]
        %v1464 = vld [vmem:[%s1263 + $0x4a] sm:$0xff]
        %v1465 = vld [vmem:[%s1263 + $0x52] sm:$0xff]
        %v1466 = vld [vmem:[%s1263 + $0x62] sm:$0xff]
        %v1467 = vld [vmem:[%s1263 + $0x6a] sm:$0xff]
        %v1468 = vld [vmem:[%s1263 + $0x7a] sm:$0xff]
        %v1469 = vld [vmem:[%s1263 + $0x82] sm:$0xff]
        %v1470 = vld [vmem:[%s1263 + $0x92] sm:$0xff]
        %v1471 = vld [vmem:[%s1263 + $0x9a] sm:$0xff]
        %v1472 = vld [vmem:[%s1263 + $0xaa] sm:$0xff]
        %v1473 = vld [vmem:[%s1263 + $0xb2] sm:$0xff]
        %v1474 = vld [vmem:[%s1263 + $0xc2] sm:$0xff]
        %v1475 = vld [vmem:[%s1263 + $0xca] sm:$0xff]
        %v1476 = vld [vmem:[%s1263 + $0xda] sm:$0xff]
        %v1477 = vld [vmem:[%s1263 + $0xe2] sm:$0xff]
        %v1478 = vld [vmem:[%s1263 + $0xf2] sm:$0xff]
        %v1479 = vld [vmem:[%s1263 + $0xfa] sm:$0xff]
        %v1480 = vld [vmem:[%s1263 + $0x10a] sm:$0xff]
        %v1481 = vld [vmem:[%s1263 + $0x112] sm:$0xff]
        %v1482 = vld [vmem:[%s1263 + $0x122] sm:$0xff]
        %v1483 = vld [vmem:[%s1263 + $0x12a] sm:$0xff]
        %v1484 = vld [vmem:[%s1263 + $0x13a] sm:$0xff]
        %v1485 = vld [vmem:[%s1263 + $0x142] sm:$0xff]
        %v1486 = vld [vmem:[%s1263 + $0x152] sm:$0xff]
        %v1487 = vld [vmem:[%s1263 + $0x15a] sm:$0xff]
        %v1488 = vld [vmem:[%s1263 + $0x16a] sm:$0xff]
        %v1489 = vld [vmem:[%s1263 + $0x172] sm:$0xff]
        %v1490 = vperm.slane %v679, 0
        %v1491 = vmul.f32 %v1458, %v1490
        %v1492 = vmul.f32 %v1459, %v1490
        %v1493 = vmul.f32 %v1460, %v1490
        %v1494 = vmul.f32 %v1461, %v1490
        %v1495 = vmul.f32 %v1462, %v1490
        %v1496 = vmul.f32 %v1463, %v1490
        %v1497 = vmul.f32 %v1464, %v1490
        %v1498 = vmul.f32 %v1465, %v1490
        %v1499 = vmul.f32 %v1466, %v1490
        %v1500 = vmul.f32 %v1467, %v1490
        %v1501 = vmul.f32 %v1468, %v1490
        %v1502 = vmul.f32 %v1469, %v1490
        %v1503 = vmul.f32 %v1470, %v1490
        %v1504 = vmul.f32 %v1471, %v1490
        %v1505 = vmul.f32 %v1472, %v1490
        %v1506 = vmul.f32 %v1473, %v1490
        %v1507 = vmul.f32 %v1474, %v1490
        %v1508 = vmul.f32 %v1475, %v1490
        %v1509 = vmul.f32 %v1476, %v1490
        %v1510 = vmul.f32 %v1477, %v1490
        %v1511 = vmul.f32 %v1478, %v1490
        %v1512 = vmul.f32 %v1479, %v1490
        %v1513 = vmul.f32 %v1480, %v1490
        %v1514 = vmul.f32 %v1481, %v1490
        %v1515 = vmul.f32 %v1482, %v1490
        %v1516 = vmul.f32 %v1483, %v1490
        %v1517 = vmul.f32 %v1484, %v1490
        %v1518 = vmul.f32 %v1485, %v1490
        %v1519 = vmul.f32 %v1486, %v1490
        %v1520 = vmul.f32 %v1487, %v1490
        %v1521 = vmul.f32 %v1488, %v1490
        %v1522 = vmul.f32 %v1489, %v1490
        %v1523 = vadd.f32 %v1426, %v1491
        %v1524 = vadd.f32 %v1427, %v1492
        %v1525 = vadd.f32 %v1428, %v1493
        %v1526 = vadd.f32 %v1429, %v1494
        %v1527 = vadd.f32 %v1430, %v1495
        %v1528 = vadd.f32 %v1431, %v1496
        %v1529 = vadd.f32 %v1432, %v1497
        %v1530 = vadd.f32 %v1433, %v1498
        %v1531 = vadd.f32 %v1434, %v1499
        %v1532 = vadd.f32 %v1435, %v1500
        %v1533 = vadd.f32 %v1436, %v1501
        %v1534 = vadd.f32 %v1437, %v1502
        %v1535 = vadd.f32 %v1438, %v1503
        %v1536 = vadd.f32 %v1439, %v1504
        %v1537 = vadd.f32 %v1440, %v1505
        %v1538 = vadd.f32 %v1441, %v1506
        %v1539 = vadd.f32 %v1442, %v1507
        %v1540 = vadd.f32 %v1443, %v1508
        %v1541 = vadd.f32 %v1444, %v1509
        %v1542 = vadd.f32 %v1445, %v1510
        %v1543 = vadd.f32 %v1446, %v1511
        %v1544 = vadd.f32 %v1447, %v1512
        %v1545 = vadd.f32 %v1448, %v1513
        %v1546 = vadd.f32 %v1449, %v1514
        %v1547 = vadd.f32 %v1450, %v1515
        %v1548 = vadd.f32 %v1451, %v1516
        %v1549 = vadd.f32 %v1452, %v1517
        %v1550 = vadd.f32 %v1453, %v1518
        %v1551 = vadd.f32 %v1454, %v1519
        %v1552 = vadd.f32 %v1455, %v1520
        %v1553 = vadd.f32 %v1456, %v1521
        %v1554 = vadd.f32 %v1457, %v1522
        %v1556 = vperm.slane %v680, 0
        %v1558 = vadd.f32 %v1523, %v1556
        %v1559 = vadd.f32 %v1524, %v1556
        %v1560 = vadd.f32 %v1525, %v1556
        %v1561 = vadd.f32 %v1526, %v1556
        %v1562 = vadd.f32 %v1527, %v1556
        %v1563 = vadd.f32 %v1528, %v1556
        %v1564 = vadd.f32 %v1529, %v1556
        %v1565 = vadd.f32 %v1530, %v1556
        %v1566 = vadd.f32 %v1531, %v1556
        %v1567 = vadd.f32 %v1532, %v1556
        %v1568 = vadd.f32 %v1533, %v1556
        %v1569 = vadd.f32 %v1534, %v1556
        %v1570 = vadd.f32 %v1535, %v1556
        %v1571 = vadd.f32 %v1536, %v1556
        %v1572 = vadd.f32 %v1537, %v1556
        %v1573 = vadd.f32 %v1538, %v1556
        %v1574 = vadd.f32 %v1539, %v1556
        %v1575 = vadd.f32 %v1540, %v1556
        %v1576 = vadd.f32 %v1541, %v1556
        %v1577 = vadd.f32 %v1542, %v1556
        %v1578 = vadd.f32 %v1543, %v1556
        %v1579 = vadd.f32 %v1544, %v1556
        %v1580 = vadd.f32 %v1545, %v1556
        %v1581 = vadd.f32 %v1546, %v1556
        %v1582 = vadd.f32 %v1547, %v1556
        %v1583 = vadd.f32 %v1548, %v1556
        %v1584 = vadd.f32 %v1549, %v1556
        %v1585 = vadd.f32 %v1550, %v1556
        %v1586 = vadd.f32 %v1551, %v1556
        %v1587 = vadd.f32 %v1552, %v1556
        %v1588 = vadd.f32 %v1553, %v1556
        %v1589 = vadd.f32 %v1554, %v1556
        %v1590 = vmax.f32 %v1558, 0.0
        %v1591 = vmax.f32 %v1559, 0.0
        %v1592 = vmax.f32 %v1560, 0.0
        %v1593 = vmax.f32 %v1561, 0.0
        %v1594 = vmax.f32 %v1562, 0.0
        %v1595 = vmax.f32 %v1563, 0.0
        %v1596 = vmax.f32 %v1564, 0.0
        %v1597 = vmax.f32 %v1565, 0.0
        %v1598 = vmax.f32 %v1566, 0.0
        %v1599 = vmax.f32 %v1567, 0.0
        %v1600 = vmax.f32 %v1568, 0.0
        %v1601 = vmax.f32 %v1569, 0.0
        %v1602 = vmax.f32 %v1570, 0.0
        %v1603 = vmax.f32 %v1571, 0.0
        %v1604 = vmax.f32 %v1572, 0.0
        %v1605 = vmax.f32 %v1573, 0.0
        %v1606 = vmax.f32 %v1574, 0.0
        %v1607 = vmax.f32 %v1575, 0.0
        %v1608 = vmax.f32 %v1576, 0.0
        %v1609 = vmax.f32 %v1577, 0.0
        %v1610 = vmax.f32 %v1578, 0.0
        %v1611 = vmax.f32 %v1579, 0.0
        %v1612 = vmax.f32 %v1580, 0.0
        %v1613 = vmax.f32 %v1581, 0.0
        %v1614 = vmax.f32 %v1582, 0.0
        %v1615 = vmax.f32 %v1583, 0.0
        %v1616 = vmax.f32 %v1584, 0.0
        %v1617 = vmax.f32 %v1585, 0.0
        %v1618 = vmax.f32 %v1586, 0.0
        %v1619 = vmax.f32 %v1587, 0.0
        %v1620 = vmax.f32 %v1588, 0.0
        %v1621 = vmax.f32 %v1589, 0.0
        %v1622 = vmin.f32 %v1590, 6.0
        %v1623 = vmin.f32 %v1591, 6.0
        %v1624 = vmin.f32 %v1592, 6.0
        %v1625 = vmin.f32 %v1593, 6.0
        %v1626 = vmin.f32 %v1594, 6.0
        %v1627 = vmin.f32 %v1595, 6.0
        %v1628 = vmin.f32 %v1596, 6.0
        %v1629 = vmin.f32 %v1597, 6.0
        %v1630 = vmin.f32 %v1598, 6.0
        %v1631 = vmin.f32 %v1599, 6.0
        %v1632 = vmin.f32 %v1600, 6.0
        %v1633 = vmin.f32 %v1601, 6.0
        %v1634 = vmin.f32 %v1602, 6.0
        %v1635 = vmin.f32 %v1603, 6.0
        %v1636 = vmin.f32 %v1604, 6.0
        %v1637 = vmin.f32 %v1605, 6.0
        %v1638 = vmin.f32 %v1606, 6.0
        %v1639 = vmin.f32 %v1607, 6.0
        %v1640 = vmin.f32 %v1608, 6.0
        %v1641 = vmin.f32 %v1609, 6.0
        %v1642 = vmin.f32 %v1610, 6.0
        %v1643 = vmin.f32 %v1611, 6.0
        %v1644 = vmin.f32 %v1612, 6.0
        %v1645 = vmin.f32 %v1613, 6.0
        %v1646 = vmin.f32 %v1614, 6.0
        %v1647 = vmin.f32 %v1615, 6.0
        %v1648 = vmin.f32 %v1616, 6.0
        %v1649 = vmin.f32 %v1617, 6.0
        %v1650 = vmin.f32 %v1618, 6.0
        %v1651 = vmin.f32 %v1619, 6.0
        %v1652 = vmin.f32 %v1620, 6.0
        %v1653 = vmin.f32 %v1621, 6.0
        %v1654 = vld [vmem:[%s5] sm:$0xff]
        %v1655 = vld [vmem:[%s6] sm:$0xff]
        %1657 = vset.pattern.permute.xlu0 0
        %1658 = vperm.xlu0 %1657, %v1655
        %v1659 = vpop.permute.xlu0 %1658
        %v1662 = vsel %vm601, %v1654, 0
        %v1665 = vsel %vm601, %v1622, 0
        %v1668 = vsel %vm601, %v1623, 0
        %v1671 = vsel %vm601, %v1624, 0
        %v1674 = vsel %vm601, %v1625, 0
        %v1677 = vsel %vm601, %v1626, 0
        %v1680 = vsel %vm601, %v1627, 0
        %v1683 = vsel %vm601, %v1628, 0
        %v1686 = vsel %vm601, %v1629, 0
        %v1689 = vsel %vm601, %v1630, 0
        %v1692 = vsel %vm601, %v1631, 0
        %v1695 = vsel %vm601, %v1632, 0
        %v1698 = vsel %vm601, %v1633, 0
        %v1701 = vsel %vm601, %v1634, 0
        %v1704 = vsel %vm601, %v1635, 0
        %v1707 = vsel %vm601, %v1636, 0
        %v1710 = vsel %vm601, %v1637, 0
        %v1713 = vsel %vm601, %v1638, 0
        %v1716 = vsel %vm601, %v1639, 0
        %v1719 = vsel %vm601, %v1640, 0
        %v1722 = vsel %vm601, %v1641, 0
        %v1725 = vsel %vm601, %v1642, 0
        %v1728 = vsel %vm601, %v1643, 0
        %v1731 = vsel %vm601, %v1644, 0
        %v1734 = vsel %vm601, %v1645, 0
        %v1737 = vsel %vm601, %v1646, 0
        %v1740 = vsel %vm601, %v1647, 0
        %v1743 = vsel %vm601, %v1648, 0
        %v1746 = vsel %vm601, %v1649, 0
        %v1749 = vsel %vm601, %v1650, 0
        %v1752 = vsel %vm601, %v1651, 0
        %v1755 = vsel %vm601, %v1652, 0
        %v1758 = vsel %vm601, %v1653, 0
        %1760 = vmatpush.xpose.msra.mxu0 %v1710
        %1761 = vmatpush.xpose.msra.mxu0 %v1707
        %1762 = vmatpush.xpose.msra.mxu0 %v1704
        %1763 = vmatpush.xpose.msra.mxu0 %v1701
        %1764 = vmatpush.xpose.msra.mxu0 %v1698
        %1765 = vmatpush.xpose.msra.mxu0 %v1695
        %1766 = vmatpush.xpose.msra.mxu0 %v1692
        %1767 = vmatpush.xpose.msra.mxu0 %v1689
        %1768 = vmatpush.xpose.msra.mxu0 %v1686
        %1769 = vmatpush.xpose.msra.mxu0 %v1683
        %1770 = vmatpush.xpose.msra.mxu0 %v1680
        %1771 = vmatpush.xpose.msra.mxu0 %v1677
        %1772 = vmatpush.xpose.msra.mxu0 %v1674
        %1773 = vmatpush.xpose.msra.mxu0 %v1671
        %1774 = vmatpush.xpose.msra.mxu0 %v1668
        %1775 = vmatpush.xpose.msra.mxu0 %v1665
        %1776 = vmatmul.f32.gmra.mxu0 %v1662
        %v1777 = vpop.f32.mrf.mxu0
        %v1778 = vadd.f32 %v1659, %v1777
        %1779 = vdwg.mxu0
        %1780 = vmatpush.xpose.msra.mxu0 %v1758
        %1781 = vmatpush.xpose.msra.mxu0 %v1755
        %1782 = vmatpush.xpose.msra.mxu0 %v1752
        %1783 = vmatpush.xpose.msra.mxu0 %v1749
        %1784 = vmatpush.xpose.msra.mxu0 %v1746
        %1785 = vmatpush.xpose.msra.mxu0 %v1743
        %1786 = vmatpush.xpose.msra.mxu0 %v1740
        %1787 = vmatpush.xpose.msra.mxu0 %v1737
        %1788 = vmatpush.xpose.msra.mxu0 %v1734
        %1789 = vmatpush.xpose.msra.mxu0 %v1731
        %1790 = vmatpush.xpose.msra.mxu0 %v1728
        %1791 = vmatpush.xpose.msra.mxu0 %v1725
        %1792 = vmatpush.xpose.msra.mxu0 %v1722
        %1793 = vmatpush.xpose.msra.mxu0 %v1719
        %1794 = vmatpush.xpose.msra.mxu0 %v1716
        %1795 = vmatpush.xpose.msra.mxu0 %v1713
        %1796 = vmatmul.f32.gmra.mxu0 %v1662
        %v1797 = vpop.f32.mrf.mxu0
        %v1798 = vadd.f32 %v1659, %v1797
        %1799 = vdwg.mxu0
        %1800 = vst [vmem:[%s271] sm:$0xff] %v1778
        %1801 = vst [vmem:[%s271 + $0x8] sm:$0xff] %v1798
        %s1802 = sand.u32 %s181, 1
        %s1803 = scalar_lea.sflag [#allocation4], %s1802
        %s1804 = sand.u32 %s181, 1
        %s1805 = smul.addr %s1804, 16
        %s1806 = scalar_lea.vmem [#allocation3], %s1805
        // Predicated region
        $region49: #{tpu_custom_call.1} parent=47 // pred_check
          %p1807 = pneg %p191
        $region50: #{tpu_custom_call.1} parent=47 // pred_check_branch
          %1809 = sbr.rel (%p1807) target = $region52
        $region51: #{tpu_custom_call.1} parent=47 // pred_region
          %1811 = vsyncadd %s1803, 0
          %s1812 = smul.addr %s21, 2
          %s1813 = smul.addr %s1812, 8
          %s1814 = scalar_lea.hbm %s7, %s1813
          %s1816 = sshll.u32 %s1806, 4
          %s1817 = int_to_ptr.vmem [resolvable:$true] %s1816
          %s1818 = sshll.u32 %s1814, 4
          %s1819 = int_to_ptr.hbm [resolvable:$true] %s1818
          %1821 = dma.vmem_to_hbm [thread:$0]  %s1817, 256, %s1819, %s1803
        $region52: #{tpu_custom_call.1} parent=47 // pred_fallthru
          _
      $region48: #{tpu_custom_call.1} parent=5 // pred_fallthru
        _
      %p1822 = scmp.le.s32.totalorder 2, %s16
      // Predicated region
      $region53: #{tpu_custom_call.1} parent=5 // pred_check
        %p1823 = pneg %p1822
      $region54: #{tpu_custom_call.1} parent=5 // pred_check_branch
        %1825 = sbr.rel (%p1823) target = $region56
      $region55: #{tpu_custom_call.1} parent=5 // pred_region
        %s1826 = ssub.s32 %s16, 2
        // Predicated region
        $region57: #{tpu_custom_call.1} parent=55 // pred_check
          %p1827 = pneg %p197
        $region58: #{tpu_custom_call.1} parent=55 // pred_check_branch
          %1829 = sbr.rel (%p1827) target = $region60
        $region59: #{tpu_custom_call.1} parent=55 // pred_region
          %s1830 = sand.u32 %s182, 1
          %s1831 = scalar_lea.sflag [#allocation4], %s1830
          %s1832 = sand.u32 %s182, 1
          %s1833 = smul.addr %s1832, 16
          %s1834 = scalar_lea.vmem [#allocation3], %s1833
          %1836 = dma.done %s1831, 256
        $region60: #{tpu_custom_call.1} parent=55 // pred_fallthru
          _
      $region56: #{tpu_custom_call.1} parent=5 // pred_fallthru
        _
    $region6: #{tpu_custom_call.1} parent=1 // loop_footer
      %s20 = sadd.s32 1, %s16
    $region7: #{tpu_custom_call.1} parent=1 // loop_footer_branch
      %15 = sbr.rel target = $region3
    $region8: #{tpu_custom_call.1} parent=1 // loop_exit
      _
    %1837 = vsyncpa [#allocation4], 1
    %s1838 = scalar_lea.sflag [#allocation4], 1
    %1839 = vsyncpa %s1838, 1

</llo_original>
